<compile_context>
chip_gen: v7x
topology: tpu7x:2x2x1
jax: 0.10.0
libtpu: 0.0.40
codegen_flags: <defaults>
</compile_context>

<pallas_src>
import functools

import jax
import jax.numpy as jnp
from jax.experimental import pallas as pl
from jax.experimental.pallas import tpu as pltpu

_VMEM = pl.BlockSpec(memory_space=pltpu.MemorySpace.VMEM)
_BN_EPS = 1e-5
_C = 128          # all channel dims (20/40/60/80/40/11) padded to 128 lanes
_SLOT0 = 32       # stage-1 per-sample slot (25 valid rows, padded to 32)


# ------------------------------ fused kernel ------------------------------- #

def _fused_kernel(p0_ref, w0_ref, pb_ref,
                  w1_ref, g1_ref, be1_ref,
                  w2_ref, g2_ref, be2_ref,
                  w3_ref, g3_ref, be3_ref,
                  wl2_ref, bl2_ref, wl3_ref, bl3_ref,
                  q1_ref, q2_ref, gsel_ref,
                  o_ref, *, nb):
    """Entire ManifoldNetComplex forward for a (small) batch of nb samples."""
    f32 = jnp.float32
    bf16 = jnp.bfloat16
    R0 = nb * _SLOT0                                      # stacked rows, slot 32

    # ---- stage 1: complex wFM conv (1->20, kernel (5,1), stride (5,1)) as one
    #      MXU matmul over the stacked [re; im] patch rows (8-aligned slots).
    y = jnp.dot(p0_ref[...].astype(bf16), w0_ref[...],
                preferred_element_type=f32)               # (2*R0, 128)
    yr = y[:R0, :]
    yi = y[R0:, :]

    # ---- proj1 (complex shrinkage) + SURE magnitude readout + ReLU,
    #      algebraically simplified: shrink-then-remagnitude == max(|z|+bias,0).
    h = jnp.maximum(jnp.sqrt(yr * yr + yi * yi) + pb_ref[...], 0.0)   # (R0,128)

    zeros8 = jnp.zeros((8, _C), f32)

    def conv_bn_relu(x, w_ref, kh, g_ref, be_ref, slot, valid_in):
        # (k,1)-Conv2d over the batch-stacked buffer as ONE tap-stacked matmul:
        # lhs[:, k*128:(k+1)*128] = x shifted down by k rows.  Rows past each
        # slot's valid range are garbage but are masked out of the BN stats and
        # never read by valid rows of later stages.  Training-mode BatchNorm
        # (batch statistics, single pass), then ReLU.  Padded channels have
        # gamma = beta = 0 and stay exactly 0.
        R = x.shape[0]
        xp = jnp.concatenate([x, zeros8], axis=0)         # (R+8, 128)
        lhs = jnp.concatenate([xp[k:k + R, :] for k in range(kh)], axis=1)
        yc = jnp.dot(lhs.astype(bf16), w_ref[...],
                     preferred_element_type=f32)          # (R, 128)
        valid = valid_in - kh + 1
        rid = jax.lax.broadcasted_iota(jnp.int32, (R, _C), 0)
        mask = (rid & (slot - 1)) < valid                 # slot is a power of 2
        ym = jnp.where(mask, yc, 0.0)
        inv_n = 1.0 / float(nb * valid)
        mu = jnp.sum(ym, axis=0, keepdims=True) * inv_n
        var = jnp.maximum(
            jnp.sum(ym * ym, axis=0, keepdims=True) * inv_n - mu * mu, 0.0)
        scale = g_ref[...] * jax.lax.rsqrt(var + _BN_EPS)
        shift = be_ref[...] - mu * scale
        return jnp.maximum(yc * scale + shift, 0.0)

    def maxpool2(x, q_ref):
        # MaxPool2d((2,1)) in-register: constant 0/1 selection matmul stacks the
        # compacted even rows over the compacted odd rows (slot halving keeps
        # 8-alignment), then a single elementwise max.
        R = x.shape[0]
        sel = jnp.dot(q_ref[...], x, preferred_element_type=f32)      # (R,128)
        return jnp.maximum(sel[:R // 2, :], sel[R // 2:, :])          # (R/2,128)

    # NOTE: pre-BatchNorm conv biases are exactly cancelled by the BN mean
    # subtraction, so they are omitted (dead parameters).
    h1 = conv_bn_relu(h, w1_ref, 5, g1_ref, be1_ref, 32, 25)   # valid 21 / slot 32
    p1 = maxpool2(h1, q1_ref)                                  # valid 10 / slot 16
    h2 = conv_bn_relu(p1, w2_ref, 5, g2_ref, be2_ref, 16, 10)  # valid 6  / slot 16
    p2 = maxpool2(h2, q2_ref)                                  # valid 3  / slot 8
    h3 = conv_bn_relu(p2, w3_ref, 3, g3_ref, be3_ref, 8, 3)    # valid 1  / slot 8

    # ---- head: gather the nb per-sample feature rows into one (8,128) tile,
    #      squeeze + linear_2 + ReLU + linear_3, one dense store.
    feat = jnp.dot(gsel_ref[...], h3, preferred_element_type=f32)     # (Bp,128)
    t = jnp.maximum(
        jnp.dot(feat.astype(bf16), wl2_ref[...],
                preferred_element_type=f32) + bl2_ref[...], 0.0)
    o_ref[...] = (jnp.dot(t.astype(bf16), wl3_ref[...],
                          preferred_element_type=f32) + bl3_ref[...])


# --------------------------------- glue ------------------------------------ #

def _first_layer_patches(x):
    """x: (B, 2, 1, 128, 1) -> stacked [re; im] stride-5 kernel-5 patches with
    8-aligned per-sample slots: shape (2*B*32, 8); taps padded 5 -> 8 and output
    positions padded 25 -> 32 with zeros."""
    B = x.shape[0]
    xr = x[:, 0, 0, :, 0]                               # (B,128)
    xi = x[:, 1, 0, :, 0]
    xc = jnp.concatenate([xr, xi], axis=0)              # (2B,128)
    p = xc[:, :125].reshape(2 * B, 25, 5)               # p[r,j,k] = xc[r, 5j+k]
    p = jnp.pad(p, ((0, 0), (0, _SLOT0 - 25), (0, 3)))  # (2B, 32, 8)
    return p.reshape(2 * B * _SLOT0, 8)


def _pool_matrix(R):
    """(R, R) 0/1 selector: row j (< R/2) picks input row 2j, row R/2+j picks
    row 2j+1.  Because slots halve with the rows, per-slot pooling indices map
    to exactly 2*global_row."""
    r = jnp.arange(R)
    half = R // 2
    tgt = jnp.where(r < half, 2 * r, 2 * (r - half) + 1)
    return (jnp.arange(R)[None, :] == tgt[:, None]).astype(jnp.float32)


def _gather_matrix(nb, r_in, bp):
    """(bp, r_in) 0/1 selector: row b (< nb) picks input row b*8 (the single
    valid post-conv3 row of sample b); padded rows are zero."""
    b = jnp.arange(bp)
    tgt = jnp.where(b < nb, b * 8, -1)
    return (jnp.arange(r_in)[None, :] == tgt[:, None]).astype(jnp.float32)


def init_params(key):
    ks = jax.random.split(key, 9)
    n = jax.random.normal

    def conv_w(k, cout, cin, kh):
        # PyTorch [Cout, Cin, kh] (kw=1 squeezed) -> tap-stacked (kh*128, 128)
        # bf16 weight with W[k*128 + c, o] = w[o, c, k]; padded rows/cols zero.
        w = 0.1 * n(k, (cout, cin, kh), dtype=jnp.float32)
        wt = jnp.transpose(w, (2, 1, 0))                        # (kh, cin, cout)
        full = jnp.zeros((kh, _C, _C), jnp.float32).at[:, :cin, :cout].set(wt)
        return full.reshape(kh * _C, _C).astype(jnp.bfloat16)

    def row(v, c):
        return jnp.zeros((1, _C), jnp.float32).at[0, :c].set(v)

    def lin_w(k, cin, cout):
        w = 0.1 * n(k, (cin, cout), dtype=jnp.float32)          # (in, out)
        return (jnp.zeros((_C, _C), jnp.float32).at[:cin, :cout].set(w)
                .astype(jnp.bfloat16))

    return dict(
        cplx_w_raw=n(ks[0], (20, 5), dtype=jnp.float32),        # wFM conv raw weights
        proj_bias=row(0.1 * n(ks[1], (20,), dtype=jnp.float32), 20),  # ReLU4Dsp bias
        w1=conv_w(ks[2], 40, 20, 5),
        g1=row(jnp.ones((40,), jnp.float32), 40), be1=row(jnp.zeros((40,), jnp.float32), 40),
        w2=conv_w(ks[3], 60, 40, 5),
        g2=row(jnp.ones((60,), jnp.float32), 60), be2=row(jnp.zeros((60,), jnp.float32), 60),
        w3=conv_w(ks[4], 80, 60, 3),
        g3=row(jnp.ones((80,), jnp.float32), 80), be3=row(jnp.zeros((80,), jnp.float32), 80),
        wl2=lin_w(ks[5], 80, 40), bl2=row(0.1 * n(ks[6], (40,), dtype=jnp.float32), 40),
        wl3=lin_w(ks[7], 40, 11), bl3=row(0.1 * n(ks[8], (11,), dtype=jnp.float32), 11),
        loss_weight=jnp.array([0.5], jnp.float32),              # unused when labels=None
    )


@jax.jit
def manifoldnet_forward(x, params):
    """x: (B, 2, 1, 128, 1) float32.  Returns (logits (B, 11), res_loss scalar)."""
    B = x.shape[0]
    p0 = _first_layer_patches(x)                                # (2*B*32, 8)

    # wFM convex-combination weights: softmax over taps, padded to (8, 128).
    w_norm = jax.nn.softmax(params["cplx_w_raw"], axis=1).T     # (5, 20)
    w0 = (jnp.zeros((8, _C), jnp.float32).at[:5, :20].set(w_norm)
          .astype(jnp.bfloat16))

    q1 = _pool_matrix(B * 32)                                   # maxpool 1 selector
    q2 = _pool_matrix(B * 16)                                   # maxpool 2 selector
    bp = max(8, ((B + 7) // 8) * 8)                             # head rows padded to 8
    gsel = _gather_matrix(B, B * 8, bp)                         # head gather selector

    out = pl.pallas_call(
        functools.partial(_fused_kernel, nb=B),
        out_shape=jax.ShapeDtypeStruct((bp, _C), jnp.float32),
        in_specs=[_VMEM] * 19,
        out_specs=_VMEM,
    )(p0, w0, params["proj_bias"],
      params["w1"], params["g1"], params["be1"],
      params["w2"], params["g2"], params["be2"],
      params["w3"], params["g3"], params["be3"],
      params["wl2"], params["bl2"], params["wl3"], params["bl3"],
      q1, q2, gsel)

    logits = out[:B, :11]
    # labels=None -> SURE losses are None -> res_loss = 0 (loss_weight unused).
    res_loss = jnp.zeros((), jnp.float32)
    return logits, res_loss


if __name__ == "__main__":
    key = jax.random.PRNGKey(0)
    kx, kp = jax.random.split(key)
    # Batch=2, complex (re/im) single-channel signal of length 128 (architecture-fixed).
    x = jax.random.normal(kx, (2, 2, 1, 128, 1), dtype=jnp.float32)
    params = init_params(kp)

    logits, res_loss = manifoldnet_forward(x, params)
    jax.block_until_ready((logits, res_loss))

    assert logits.shape == (2, 11) and logits.dtype == jnp.float32
    assert res_loss.shape == ()
    assert bool(jnp.all(jnp.isfinite(logits)))
    print("KERNEL_OK")
</pallas_src>

<mosaic_0001>
module attributes {stable_mosaic.version = 11 : i64} {
  func.func @_fused_kernel(%arg0: memref<128x8xf32, #tpu.memory_space<vmem>>, %arg1: memref<8x128xbf16, #tpu.memory_space<vmem>>, %arg2: memref<1x128xf32, #tpu.memory_space<vmem>>, %arg3: memref<640x128xbf16, #tpu.memory_space<vmem>>, %arg4: memref<1x128xf32, #tpu.memory_space<vmem>>, %arg5: memref<1x128xf32, #tpu.memory_space<vmem>>, %arg6: memref<640x128xbf16, #tpu.memory_space<vmem>>, %arg7: memref<1x128xf32, #tpu.memory_space<vmem>>, %arg8: memref<1x128xf32, #tpu.memory_space<vmem>>, %arg9: memref<384x128xbf16, #tpu.memory_space<vmem>>, %arg10: memref<1x128xf32, #tpu.memory_space<vmem>>, %arg11: memref<1x128xf32, #tpu.memory_space<vmem>>, %arg12: memref<128x128xbf16, #tpu.memory_space<vmem>>, %arg13: memref<1x128xf32, #tpu.memory_space<vmem>>, %arg14: memref<128x128xbf16, #tpu.memory_space<vmem>>, %arg15: memref<1x128xf32, #tpu.memory_space<vmem>>, %arg16: memref<64x64xf32, #tpu.memory_space<vmem>>, %arg17: memref<32x32xf32, #tpu.memory_space<vmem>>, %arg18: memref<8x16xf32, #tpu.memory_space<vmem>>, %arg19: memref<8x128xf32, #tpu.memory_space<vmem>>) attributes {dimension_semantics = [], scalar_prefetch = 0 : i64, scratch_operands = 0 : i64, tpu.core_type = #tpu.core_type<tc>} {
    %c0 = arith.constant 0 : index
    %c0_0 = arith.constant 0 : index
    %0 = vector.load %arg0[%c0, %c0_0] : memref<128x8xf32, #tpu.memory_space<vmem>>, vector<128x8xf32>
    %1 = arith.truncf %0 : vector<128x8xf32> to vector<128x8xbf16>
    %c0_1 = arith.constant 0 : index
    %c0_2 = arith.constant 0 : index
    %2 = vector.load %arg1[%c0_1, %c0_2] : memref<8x128xbf16, #tpu.memory_space<vmem>>, vector<8x128xbf16>
    %cst = arith.constant dense<0.000000e+00> : vector<128x128xf32>
    %3 = tpu.matmul %1, %2, %cst {dimension_numbers = #tpu.dot_dimension_numbers<[1], [0], [0], [1], [0, 0, 1, 1], [], []>} : vector<128x8xbf16>, vector<8x128xbf16>, vector<128x128xf32> -> vector<128x128xf32>
    %4 = vector.extract_strided_slice %3 {offsets = [0, 0], sizes = [64, 128], strides = [1, 1]} : vector<128x128xf32> to vector<64x128xf32>
    %5 = vector.extract_strided_slice %3 {offsets = [64, 0], sizes = [64, 128], strides = [1, 1]} : vector<128x128xf32> to vector<64x128xf32>
    %6 = arith.mulf %4, %4 : vector<64x128xf32>
    %7 = arith.mulf %5, %5 : vector<64x128xf32>
    %8 = arith.addf %6, %7 : vector<64x128xf32>
    %9 = math.sqrt %8 : vector<64x128xf32>
    %c0_3 = arith.constant 0 : index
    %c0_4 = arith.constant 0 : index
    %10 = vector.load %arg2[%c0_3, %c0_4] : memref<1x128xf32, #tpu.memory_space<vmem>>, vector<1x128xf32>
    %11 = vector.broadcast %10 : vector<1x128xf32> to vector<64x128xf32>
    %12 = arith.addf %9, %11 : vector<64x128xf32>
    %cst_5 = arith.constant 0.000000e+00 : f32
    %13 = vector.broadcast %cst_5 : f32 to vector<64x128xf32>
    %14 = arith.maximumf %12, %13 : vector<64x128xf32>
    %cst_6 = arith.constant 0.000000e+00 : f32
    %15 = vector.broadcast %cst_6 : f32 to vector<8x128xf32>
    %16 = tpu.concatenate %14, %15 in 0 : vector<64x128xf32>, vector<8x128xf32> -> vector<72x128xf32>
    %17 = vector.extract_strided_slice %16 {offsets = [0, 0], sizes = [64, 128], strides = [1, 1]} : vector<72x128xf32> to vector<64x128xf32>
    %18 = vector.extract_strided_slice %16 {offsets = [1, 0], sizes = [64, 128], strides = [1, 1]} : vector<72x128xf32> to vector<64x128xf32>
    %19 = vector.extract_strided_slice %16 {offsets = [2, 0], sizes = [64, 128], strides = [1, 1]} : vector<72x128xf32> to vector<64x128xf32>
    %20 = vector.extract_strided_slice %16 {offsets = [3, 0], sizes = [64, 128], strides = [1, 1]} : vector<72x128xf32> to vector<64x128xf32>
    %21 = vector.extract_strided_slice %16 {offsets = [4, 0], sizes = [64, 128], strides = [1, 1]} : vector<72x128xf32> to vector<64x128xf32>
    %22 = tpu.concatenate %17, %18, %19, %20, %21 in 1 : vector<64x128xf32>, vector<64x128xf32>, vector<64x128xf32>, vector<64x128xf32>, vector<64x128xf32> -> vector<64x640xf32>
    %23 = arith.truncf %22 : vector<64x640xf32> to vector<64x640xbf16>
    %c0_7 = arith.constant 0 : index
    %c0_8 = arith.constant 0 : index
    %24 = vector.load %arg3[%c0_7, %c0_8] : memref<640x128xbf16, #tpu.memory_space<vmem>>, vector<640x128xbf16>
    %cst_9 = arith.constant dense<0.000000e+00> : vector<64x128xf32>
    %25 = tpu.matmul %23, %24, %cst_9 {dimension_numbers = #tpu.dot_dimension_numbers<[1], [0], [0], [1], [0, 0, 1, 1], [], []>} : vector<64x640xbf16>, vector<640x128xbf16>, vector<64x128xf32> -> vector<64x128xf32>
    %26 = tpu.iota {dimensions = array<i32: 0>} : vector<64x128xi32>
    %c31_i32 = arith.constant 31 : i32
    %27 = vector.broadcast %c31_i32 : i32 to vector<64x128xi32>
    %28 = arith.andi %26, %27 : vector<64x128xi32>
    %c21_i32 = arith.constant 21 : i32
    %29 = vector.broadcast %c21_i32 : i32 to vector<64x128xi32>
    %30 = arith.cmpi slt, %28, %29 : vector<64x128xi32>
    %cst_10 = arith.constant 0.000000e+00 : f32
    %31 = vector.broadcast %cst_10 : f32 to vector<64x128xf32>
    %32 = arith.select %30, %25, %31 : vector<64x128xi1>, vector<64x128xf32>
    %cst_11 = arith.constant dense<0.000000e+00> : vector<128xf32>
    %33 = vector.multi_reduction <add>, %32, %cst_11 [0] : vector<64x128xf32> to vector<128xf32>
    %34 = vector.shape_cast %33 : vector<128xf32> to vector<1x128xf32>
    %cst_12 = arith.constant 0.0238095243 : f32
    %35 = vector.broadcast %cst_12 : f32 to vector<1x128xf32>
    %36 = arith.mulf %34, %35 : vector<1x128xf32>
    %37 = arith.mulf %32, %32 : vector<64x128xf32>
    %cst_13 = arith.constant dense<0.000000e+00> : vector<128xf32>
    %38 = vector.multi_reduction <add>, %37, %cst_13 [0] : vector<64x128xf32> to vector<128xf32>
    %39 = vector.shape_cast %38 : vector<128xf32> to vector<1x128xf32>
    %cst_14 = arith.constant 0.0238095243 : f32
    %40 = vector.broadcast %cst_14 : f32 to vector<1x128xf32>
    %41 = arith.mulf %39, %40 : vector<1x128xf32>
    %42 = arith.mulf %36, %36 : vector<1x128xf32>
    %43 = arith.subf %41, %42 : vector<1x128xf32>
    %cst_15 = arith.constant 0.000000e+00 : f32
    %44 = vector.broadcast %cst_15 : f32 to vector<1x128xf32>
    %45 = arith.maximumf %43, %44 : vector<1x128xf32>
    %c0_16 = arith.constant 0 : index
    %c0_17 = arith.constant 0 : index
    %46 = vector.load %arg4[%c0_16, %c0_17] : memref<1x128xf32, #tpu.memory_space<vmem>>, vector<1x128xf32>
    %cst_18 = arith.constant 9.99999974E-6 : f32
    %47 = vector.broadcast %cst_18 : f32 to vector<1x128xf32>
    %48 = arith.addf %45, %47 : vector<1x128xf32>
    %49 = math.rsqrt %48 : vector<1x128xf32>
    %50 = arith.mulf %46, %49 : vector<1x128xf32>
    %c0_19 = arith.constant 0 : index
    %c0_20 = arith.constant 0 : index
    %51 = vector.load %arg5[%c0_19, %c0_20] : memref<1x128xf32, #tpu.memory_space<vmem>>, vector<1x128xf32>
    %52 = arith.mulf %36, %50 : vector<1x128xf32>
    %53 = arith.subf %51, %52 : vector<1x128xf32>
    %54 = vector.broadcast %50 : vector<1x128xf32> to vector<64x128xf32>
    %55 = arith.mulf %25, %54 : vector<64x128xf32>
    %56 = vector.broadcast %53 : vector<1x128xf32> to vector<64x128xf32>
    %57 = arith.addf %55, %56 : vector<64x128xf32>
    %cst_21 = arith.constant 0.000000e+00 : f32
    %58 = vector.broadcast %cst_21 : f32 to vector<64x128xf32>
    %59 = arith.maximumf %57, %58 : vector<64x128xf32>
    %c0_22 = arith.constant 0 : index
    %c0_23 = arith.constant 0 : index
    %60 = vector.load %arg16[%c0_22, %c0_23] : memref<64x64xf32, #tpu.memory_space<vmem>>, vector<64x64xf32>
    %cst_24 = arith.constant dense<0.000000e+00> : vector<64x128xf32>
    %61 = tpu.matmul %60, %59, %cst_24 {dimension_numbers = #tpu.dot_dimension_numbers<[1], [0], [0], [1], [0, 0, 1, 1], [], []>} : vector<64x64xf32>, vector<64x128xf32>, vector<64x128xf32> -> vector<64x128xf32>
    %62 = vector.extract_strided_slice %61 {offsets = [0, 0], sizes = [32, 128], strides = [1, 1]} : vector<64x128xf32> to vector<32x128xf32>
    %63 = vector.extract_strided_slice %61 {offsets = [32, 0], sizes = [32, 128], strides = [1, 1]} : vector<64x128xf32> to vector<32x128xf32>
    %64 = arith.maximumf %62, %63 : vector<32x128xf32>
    %65 = tpu.concatenate %64, %15 in 0 : vector<32x128xf32>, vector<8x128xf32> -> vector<40x128xf32>
    %66 = vector.extract_strided_slice %65 {offsets = [0, 0], sizes = [32, 128], strides = [1, 1]} : vector<40x128xf32> to vector<32x128xf32>
    %67 = vector.extract_strided_slice %65 {offsets = [1, 0], sizes = [32, 128], strides = [1, 1]} : vector<40x128xf32> to vector<32x128xf32>
    %68 = vector.extract_strided_slice %65 {offsets = [2, 0], sizes = [32, 128], strides = [1, 1]} : vector<40x128xf32> to vector<32x128xf32>
    %69 = vector.extract_strided_slice %65 {offsets = [3, 0], sizes = [32, 128], strides = [1, 1]} : vector<40x128xf32> to vector<32x128xf32>
    %70 = vector.extract_strided_slice %65 {offsets = [4, 0], sizes = [32, 128], strides = [1, 1]} : vector<40x128xf32> to vector<32x128xf32>
    %71 = tpu.concatenate %66, %67, %68, %69, %70 in 1 : vector<32x128xf32>, vector<32x128xf32>, vector<32x128xf32>, vector<32x128xf32>, vector<32x128xf32> -> vector<32x640xf32>
    %72 = arith.truncf %71 : vector<32x640xf32> to vector<32x640xbf16>
    %c0_25 = arith.constant 0 : index
    %c0_26 = arith.constant 0 : index
    %73 = vector.load %arg6[%c0_25, %c0_26] : memref<640x128xbf16, #tpu.memory_space<vmem>>, vector<640x128xbf16>
    %cst_27 = arith.constant dense<0.000000e+00> : vector<32x128xf32>
    %74 = tpu.matmul %72, %73, %cst_27 {dimension_numbers = #tpu.dot_dimension_numbers<[1], [0], [0], [1], [0, 0, 1, 1], [], []>} : vector<32x640xbf16>, vector<640x128xbf16>, vector<32x128xf32> -> vector<32x128xf32>
    %75 = tpu.iota {dimensions = array<i32: 0>} : vector<32x128xi32>
    %c15_i32 = arith.constant 15 : i32
    %76 = vector.broadcast %c15_i32 : i32 to vector<32x128xi32>
    %77 = arith.andi %75, %76 : vector<32x128xi32>
    %c6_i32 = arith.constant 6 : i32
    %78 = vector.broadcast %c6_i32 : i32 to vector<32x128xi32>
    %79 = arith.cmpi slt, %77, %78 : vector<32x128xi32>
    %cst_28 = arith.constant 0.000000e+00 : f32
    %80 = vector.broadcast %cst_28 : f32 to vector<32x128xf32>
    %81 = arith.select %79, %74, %80 : vector<32x128xi1>, vector<32x128xf32>
    %cst_29 = arith.constant dense<0.000000e+00> : vector<128xf32>
    %82 = vector.multi_reduction <add>, %81, %cst_29 [0] : vector<32x128xf32> to vector<128xf32>
    %83 = vector.shape_cast %82 : vector<128xf32> to vector<1x128xf32>
    %cst_30 = arith.constant 0.0833333358 : f32
    %84 = vector.broadcast %cst_30 : f32 to vector<1x128xf32>
    %85 = arith.mulf %83, %84 : vector<1x128xf32>
    %86 = arith.mulf %81, %81 : vector<32x128xf32>
    %cst_31 = arith.constant dense<0.000000e+00> : vector<128xf32>
    %87 = vector.multi_reduction <add>, %86, %cst_31 [0] : vector<32x128xf32> to vector<128xf32>
    %88 = vector.shape_cast %87 : vector<128xf32> to vector<1x128xf32>
    %cst_32 = arith.constant 0.0833333358 : f32
    %89 = vector.broadcast %cst_32 : f32 to vector<1x128xf32>
    %90 = arith.mulf %88, %89 : vector<1x128xf32>
    %91 = arith.mulf %85, %85 : vector<1x128xf32>
    %92 = arith.subf %90, %91 : vector<1x128xf32>
    %cst_33 = arith.constant 0.000000e+00 : f32
    %93 = vector.broadcast %cst_33 : f32 to vector<1x128xf32>
    %94 = arith.maximumf %92, %93 : vector<1x128xf32>
    %c0_34 = arith.constant 0 : index
    %c0_35 = arith.constant 0 : index
    %95 = vector.load %arg7[%c0_34, %c0_35] : memref<1x128xf32, #tpu.memory_space<vmem>>, vector<1x128xf32>
    %cst_36 = arith.constant 9.99999974E-6 : f32
    %96 = vector.broadcast %cst_36 : f32 to vector<1x128xf32>
    %97 = arith.addf %94, %96 : vector<1x128xf32>
    %98 = math.rsqrt %97 : vector<1x128xf32>
    %99 = arith.mulf %95, %98 : vector<1x128xf32>
    %c0_37 = arith.constant 0 : index
    %c0_38 = arith.constant 0 : index
    %100 = vector.load %arg8[%c0_37, %c0_38] : memref<1x128xf32, #tpu.memory_space<vmem>>, vector<1x128xf32>
    %101 = arith.mulf %85, %99 : vector<1x128xf32>
    %102 = arith.subf %100, %101 : vector<1x128xf32>
    %103 = vector.broadcast %99 : vector<1x128xf32> to vector<32x128xf32>
    %104 = arith.mulf %74, %103 : vector<32x128xf32>
    %105 = vector.broadcast %102 : vector<1x128xf32> to vector<32x128xf32>
    %106 = arith.addf %104, %105 : vector<32x128xf32>
    %cst_39 = arith.constant 0.000000e+00 : f32
    %107 = vector.broadcast %cst_39 : f32 to vector<32x128xf32>
    %108 = arith.maximumf %106, %107 : vector<32x128xf32>
    %c0_40 = arith.constant 0 : index
    %c0_41 = arith.constant 0 : index
    %109 = vector.load %arg17[%c0_40, %c0_41] : memref<32x32xf32, #tpu.memory_space<vmem>>, vector<32x32xf32>
    %cst_42 = arith.constant dense<0.000000e+00> : vector<32x128xf32>
    %110 = tpu.matmul %109, %108, %cst_42 {dimension_numbers = #tpu.dot_dimension_numbers<[1], [0], [0], [1], [0, 0, 1, 1], [], []>} : vector<32x32xf32>, vector<32x128xf32>, vector<32x128xf32> -> vector<32x128xf32>
    %111 = vector.extract_strided_slice %110 {offsets = [0, 0], sizes = [16, 128], strides = [1, 1]} : vector<32x128xf32> to vector<16x128xf32>
    %112 = vector.extract_strided_slice %110 {offsets = [16, 0], sizes = [16, 128], strides = [1, 1]} : vector<32x128xf32> to vector<16x128xf32>
    %113 = arith.maximumf %111, %112 : vector<16x128xf32>
    %114 = tpu.concatenate %113, %15 in 0 : vector<16x128xf32>, vector<8x128xf32> -> vector<24x128xf32>
    %115 = vector.extract_strided_slice %114 {offsets = [0, 0], sizes = [16, 128], strides = [1, 1]} : vector<24x128xf32> to vector<16x128xf32>
    %116 = vector.extract_strided_slice %114 {offsets = [1, 0], sizes = [16, 128], strides = [1, 1]} : vector<24x128xf32> to vector<16x128xf32>
    %117 = vector.extract_strided_slice %114 {offsets = [2, 0], sizes = [16, 128], strides = [1, 1]} : vector<24x128xf32> to vector<16x128xf32>
    %118 = tpu.concatenate %115, %116, %117 in 1 : vector<16x128xf32>, vector<16x128xf32>, vector<16x128xf32> -> vector<16x384xf32>
    %119 = arith.truncf %118 : vector<16x384xf32> to vector<16x384xbf16>
    %c0_43 = arith.constant 0 : index
    %c0_44 = arith.constant 0 : index
    %120 = vector.load %arg9[%c0_43, %c0_44] : memref<384x128xbf16, #tpu.memory_space<vmem>>, vector<384x128xbf16>
    %cst_45 = arith.constant dense<0.000000e+00> : vector<16x128xf32>
    %121 = tpu.matmul %119, %120, %cst_45 {dimension_numbers = #tpu.dot_dimension_numbers<[1], [0], [0], [1], [0, 0, 1, 1], [], []>} : vector<16x384xbf16>, vector<384x128xbf16>, vector<16x128xf32> -> vector<16x128xf32>
    %122 = tpu.iota {dimensions = array<i32: 0>} : vector<16x128xi32>
    %c7_i32 = arith.constant 7 : i32
    %123 = vector.broadcast %c7_i32 : i32 to vector<16x128xi32>
    %124 = arith.andi %122, %123 : vector<16x128xi32>
    %c1_i32 = arith.constant 1 : i32
    %125 = vector.broadcast %c1_i32 : i32 to vector<16x128xi32>
    %126 = arith.cmpi slt, %124, %125 : vector<16x128xi32>
    %cst_46 = arith.constant 0.000000e+00 : f32
    %127 = vector.broadcast %cst_46 : f32 to vector<16x128xf32>
    %128 = arith.select %126, %121, %127 : vector<16x128xi1>, vector<16x128xf32>
    %cst_47 = arith.constant dense<0.000000e+00> : vector<128xf32>
    %129 = vector.multi_reduction <add>, %128, %cst_47 [0] : vector<16x128xf32> to vector<128xf32>
    %130 = vector.shape_cast %129 : vector<128xf32> to vector<1x128xf32>
    %cst_48 = arith.constant 5.000000e-01 : f32
    %131 = vector.broadcast %cst_48 : f32 to vector<1x128xf32>
    %132 = arith.mulf %130, %131 : vector<1x128xf32>
    %133 = arith.mulf %128, %128 : vector<16x128xf32>
    %cst_49 = arith.constant dense<0.000000e+00> : vector<128xf32>
    %134 = vector.multi_reduction <add>, %133, %cst_49 [0] : vector<16x128xf32> to vector<128xf32>
    %135 = vector.shape_cast %134 : vector<128xf32> to vector<1x128xf32>
    %cst_50 = arith.constant 5.000000e-01 : f32
    %136 = vector.broadcast %cst_50 : f32 to vector<1x128xf32>
    %137 = arith.mulf %135, %136 : vector<1x128xf32>
    %138 = arith.mulf %132, %132 : vector<1x128xf32>
    %139 = arith.subf %137, %138 : vector<1x128xf32>
    %cst_51 = arith.constant 0.000000e+00 : f32
    %140 = vector.broadcast %cst_51 : f32 to vector<1x128xf32>
    %141 = arith.maximumf %139, %140 : vector<1x128xf32>
    %c0_52 = arith.constant 0 : index
    %c0_53 = arith.constant 0 : index
    %142 = vector.load %arg10[%c0_52, %c0_53] : memref<1x128xf32, #tpu.memory_space<vmem>>, vector<1x128xf32>
    %cst_54 = arith.constant 9.99999974E-6 : f32
    %143 = vector.broadcast %cst_54 : f32 to vector<1x128xf32>
    %144 = arith.addf %141, %143 : vector<1x128xf32>
    %145 = math.rsqrt %144 : vector<1x128xf32>
    %146 = arith.mulf %142, %145 : vector<1x128xf32>
    %c0_55 = arith.constant 0 : index
    %c0_56 = arith.constant 0 : index
    %147 = vector.load %arg11[%c0_55, %c0_56] : memref<1x128xf32, #tpu.memory_space<vmem>>, vector<1x128xf32>
    %148 = arith.mulf %132, %146 : vector<1x128xf32>
    %149 = arith.subf %147, %148 : vector<1x128xf32>
    %150 = vector.broadcast %146 : vector<1x128xf32> to vector<16x128xf32>
    %151 = arith.mulf %121, %150 : vector<16x128xf32>
    %152 = vector.broadcast %149 : vector<1x128xf32> to vector<16x128xf32>
    %153 = arith.addf %151, %152 : vector<16x128xf32>
    %cst_57 = arith.constant 0.000000e+00 : f32
    %154 = vector.broadcast %cst_57 : f32 to vector<16x128xf32>
    %155 = arith.maximumf %153, %154 : vector<16x128xf32>
    %c0_58 = arith.constant 0 : index
    %c0_59 = arith.constant 0 : index
    %156 = vector.load %arg18[%c0_58, %c0_59] : memref<8x16xf32, #tpu.memory_space<vmem>>, vector<8x16xf32>
    %cst_60 = arith.constant dense<0.000000e+00> : vector<8x128xf32>
    %157 = tpu.matmul %156, %155, %cst_60 {dimension_numbers = #tpu.dot_dimension_numbers<[1], [0], [0], [1], [0, 0, 1, 1], [], []>} : vector<8x16xf32>, vector<16x128xf32>, vector<8x128xf32> -> vector<8x128xf32>
    %158 = arith.truncf %157 : vector<8x128xf32> to vector<8x128xbf16>
    %c0_61 = arith.constant 0 : index
    %c0_62 = arith.constant 0 : index
    %159 = vector.load %arg12[%c0_61, %c0_62] : memref<128x128xbf16, #tpu.memory_space<vmem>>, vector<128x128xbf16>
    %cst_63 = arith.constant dense<0.000000e+00> : vector<8x128xf32>
    %160 = tpu.matmul %158, %159, %cst_63 {dimension_numbers = #tpu.dot_dimension_numbers<[1], [0], [0], [1], [0, 0, 1, 1], [], []>} : vector<8x128xbf16>, vector<128x128xbf16>, vector<8x128xf32> -> vector<8x128xf32>
    %c0_64 = arith.constant 0 : index
    %c0_65 = arith.constant 0 : index
    %161 = vector.load %arg13[%c0_64, %c0_65] : memref<1x128xf32, #tpu.memory_space<vmem>>, vector<1x128xf32>
    %162 = vector.broadcast %161 : vector<1x128xf32> to vector<8x128xf32>
    %163 = arith.addf %160, %162 : vector<8x128xf32>
    %cst_66 = arith.constant 0.000000e+00 : f32
    %164 = vector.broadcast %cst_66 : f32 to vector<8x128xf32>
    %165 = arith.maximumf %163, %164 : vector<8x128xf32>
    %166 = arith.truncf %165 : vector<8x128xf32> to vector<8x128xbf16>
    %c0_67 = arith.constant 0 : index
    %c0_68 = arith.constant 0 : index
    %167 = vector.load %arg14[%c0_67, %c0_68] : memref<128x128xbf16, #tpu.memory_space<vmem>>, vector<128x128xbf16>
    %cst_69 = arith.constant dense<0.000000e+00> : vector<8x128xf32>
    %168 = tpu.matmul %166, %167, %cst_69 {dimension_numbers = #tpu.dot_dimension_numbers<[1], [0], [0], [1], [0, 0, 1, 1], [], []>} : vector<8x128xbf16>, vector<128x128xbf16>, vector<8x128xf32> -> vector<8x128xf32>
    %c0_70 = arith.constant 0 : index
    %c0_71 = arith.constant 0 : index
    %169 = vector.load %arg15[%c0_70, %c0_71] : memref<1x128xf32, #tpu.memory_space<vmem>>, vector<1x128xf32>
    %170 = vector.broadcast %169 : vector<1x128xf32> to vector<8x128xf32>
    %171 = arith.addf %168, %170 : vector<8x128xf32>
    %c0_72 = arith.constant 0 : index
    %c0_73 = arith.constant 0 : index
    %172 = vector.load %arg19[%c0_72, %c0_73] : memref<8x128xf32, #tpu.memory_space<vmem>>, vector<8x128xf32>
    tpu.vector_store %arg19[%c0_72, %c0_73], %171 {strides = array<i32>} : memref<8x128xf32, #tpu.memory_space<vmem>>, vector<8x128xf32>,
    return
  }
}

</mosaic_0001>

<llo_original>
// kernel: manifoldnet_forward.1
$region0: #{manifoldnet_forward.1}
  #allocation0 [shape = 'u32[]', space=smem, size = 0x4, offset = 0x4, fixed_abs, tag = 'smem constant byte address 0x4 - core index']
  #allocation1 [shape = 'u32[144,128]{1,0:T(1,128)}', space=vmem, size = 0x12000, scoped, tag = 'internal scratch']
  %s0 = inlined_call_operand.vmem [shape: f32[128,8], index: 0, kind: input, shape index: {}]
  %s1 = inlined_call_operand.vmem [shape: bf16[8,128], index: 1, kind: input, shape index: {}]
  %s2 = inlined_call_operand.vmem [shape: f32[1,128], index: 2, kind: input, shape index: {}]
  %s3 = inlined_call_operand.vmem [shape: bf16[640,128], index: 3, kind: input, shape index: {}]
  %s4 = inlined_call_operand.vmem [shape: f32[1,128], index: 4, kind: input, shape index: {}]
  %s5 = inlined_call_operand.vmem [shape: f32[1,128], index: 5, kind: input, shape index: {}]
  %s6 = inlined_call_operand.hbm [shape: bf16[640,128], index: 6, kind: input, shape index: {}]
  %s7 = inlined_call_operand.vmem [shape: f32[1,128], index: 7, kind: input, shape index: {}]
  %s8 = inlined_call_operand.vmem [shape: f32[1,128], index: 8, kind: input, shape index: {}]
  %s9 = inlined_call_operand.vmem [shape: bf16[384,128], index: 9, kind: input, shape index: {}]
  %s10 = inlined_call_operand.vmem [shape: f32[1,128], index: 10, kind: input, shape index: {}]
  %s11 = inlined_call_operand.vmem [shape: f32[1,128], index: 11, kind: input, shape index: {}]
  %s12 = inlined_call_operand.vmem [shape: bf16[128,128], index: 12, kind: input, shape index: {}]
  %s13 = inlined_call_operand.vmem [shape: f32[1,128], index: 13, kind: input, shape index: {}]
  %s14 = inlined_call_operand.hbm [shape: bf16[128,128], index: 14, kind: input, shape index: {}]
  %s15 = inlined_call_operand.vmem [shape: f32[1,128], index: 15, kind: input, shape index: {}]
  %s16 = inlined_call_operand.vmem [shape: f32[64,64], index: 16, kind: input, shape index: {}]
  %s17 = inlined_call_operand.vmem [shape: f32[32,32], index: 17, kind: input, shape index: {}]
  %s18 = inlined_call_operand.vmem [shape: f32[8,16], index: 18, kind: input, shape index: {}]
  %s19 = inlined_call_operand.vmem [shape: f32[8,128], index: 19, kind: output, shape index: {}]
  %s20 = sld [smem:[#allocation0]]
  $region94: #{manifoldnet_forward.1} parent=0
    _
  %s22 = ssub.s32 1, %s20
  %s23 = scalar_select 0, %s22, %s20
  $region1: #{manifoldnet_forward.1} parent=0
    #allocation2 [shape = 'u8[163840]{0}', space=vmem, size = 0x28000, scoped, tag = 'input window, operand 6, single buffered']
    #allocation3 [shape = 's32[1]{0}', space=sflag, size = 0x4, scoped, tag = 'scoped memory for manifoldnet_forward.1']
    #allocation4 [shape = 'u8[32768]{0}', space=vmem, size = 0x8000, scoped, tag = 'input window, operand 14, single buffered']
    #allocation5 [shape = 's32[1]{0}', space=sflag, size = 0x4, scoped, tag = 'scoped memory for manifoldnet_forward.1']
    %24 = vsyncpa [#allocation3], 0
    %25 = vsyncpa [#allocation5], 0
    // Predicated region
    $region2: #{manifoldnet_forward.1} parent=1 // pred_check
      _
    $region3: #{manifoldnet_forward.1} parent=1 // pred_check_branch
      %27 = sbr.rel (0) target = $region5
    $region4: #{manifoldnet_forward.1} parent=1 // pred_region
      _
    $region5: #{manifoldnet_forward.1} parent=1 // pred_fallthru
      _
    // Predicated region
    $region6: #{manifoldnet_forward.1} parent=1 // pred_check
      _
    $region7: #{manifoldnet_forward.1} parent=1 // pred_check_branch
      %29 = sbr.rel (0) target = $region9
    $region8: #{manifoldnet_forward.1} parent=1 // pred_region
      _
    $region9: #{manifoldnet_forward.1} parent=1 // pred_fallthru
      _
    // Predicated region
    $region10: #{manifoldnet_forward.1} parent=1 // pred_check
      _
    $region11: #{manifoldnet_forward.1} parent=1 // pred_check_branch
      %31 = sbr.rel (0) target = $region13
    $region12: #{manifoldnet_forward.1} parent=1 // pred_region
      _
    $region13: #{manifoldnet_forward.1} parent=1 // pred_fallthru
      _
    // Predicated region
    $region14: #{manifoldnet_forward.1} parent=1 // pred_check
      _
    $region15: #{manifoldnet_forward.1} parent=1 // pred_check_branch
      %33 = sbr.rel (0) target = $region17
    $region16: #{manifoldnet_forward.1} parent=1 // pred_region
      _
    $region17: #{manifoldnet_forward.1} parent=1 // pred_fallthru
      _
    // Predicated region
    $region18: #{manifoldnet_forward.1} parent=1 // pred_check
      _
    $region19: #{manifoldnet_forward.1} parent=1 // pred_check_branch
      %35 = sbr.rel (0) target = $region21
    $region20: #{manifoldnet_forward.1} parent=1 // pred_region
      _
    $region21: #{manifoldnet_forward.1} parent=1 // pred_fallthru
      _
    // Predicated region
    $region22: #{manifoldnet_forward.1} parent=1 // pred_check
      _
    $region23: #{manifoldnet_forward.1} parent=1 // pred_check_branch
      %37 = sbr.rel (0) target = $region25
    $region24: #{manifoldnet_forward.1} parent=1 // pred_region
      _
    $region25: #{manifoldnet_forward.1} parent=1 // pred_fallthru
      _
    // Predicated region
    $region26: #{manifoldnet_forward.1} parent=1 // pred_check
      _
    $region27: #{manifoldnet_forward.1} parent=1 // pred_check_branch
      %39 = sbr.rel (0) target = $region29
    $region28: #{manifoldnet_forward.1} parent=1 // pred_region
      %s41 = ssub.s32 5120, 5120
      %42 = vsyncadd [#allocation3], %s41
      %s43 = sshll.u32 [#allocation2], 4
      %s44 = int_to_ptr.vmem [resolvable:$true] %s43
      %49 = dma.hbm_to_vmem [thread:$0]  %s6, 5120, %s44, [#allocation3], 64, 64, 4
    $region29: #{manifoldnet_forward.1} parent=1 // pred_fallthru
      _
    // Predicated region
    $region30: #{manifoldnet_forward.1} parent=1 // pred_check
      _
    $region31: #{manifoldnet_forward.1} parent=1 // pred_check_branch
      %51 = sbr.rel (0) target = $region33
    $region32: #{manifoldnet_forward.1} parent=1 // pred_region
      _
    $region33: #{manifoldnet_forward.1} parent=1 // pred_fallthru
      _
    // Predicated region
    $region34: #{manifoldnet_forward.1} parent=1 // pred_check
      _
    $region35: #{manifoldnet_forward.1} parent=1 // pred_check_branch
      %53 = sbr.rel (0) target = $region37
    $region36: #{manifoldnet_forward.1} parent=1 // pred_region
      _
    $region37: #{manifoldnet_forward.1} parent=1 // pred_fallthru
      _
    // Predicated region
    $region38: #{manifoldnet_forward.1} parent=1 // pred_check
      _
    $region39: #{manifoldnet_forward.1} parent=1 // pred_check_branch
      %55 = sbr.rel (0) target = $region41
    $region40: #{manifoldnet_forward.1} parent=1 // pred_region
      _
    $region41: #{manifoldnet_forward.1} parent=1 // pred_fallthru
      _
    // Predicated region
    $region42: #{manifoldnet_forward.1} parent=1 // pred_check
      _
    $region43: #{manifoldnet_forward.1} parent=1 // pred_check_branch
      %57 = sbr.rel (0) target = $region45
    $region44: #{manifoldnet_forward.1} parent=1 // pred_region
      _
    $region45: #{manifoldnet_forward.1} parent=1 // pred_fallthru
      _
    // Predicated region
    $region46: #{manifoldnet_forward.1} parent=1 // pred_check
      _
    $region47: #{manifoldnet_forward.1} parent=1 // pred_check_branch
      %59 = sbr.rel (0) target = $region49
    $region48: #{manifoldnet_forward.1} parent=1 // pred_region
      _
    $region49: #{manifoldnet_forward.1} parent=1 // pred_fallthru
      _
    // Predicated region
    $region50: #{manifoldnet_forward.1} parent=1 // pred_check
      _
    $region51: #{manifoldnet_forward.1} parent=1 // pred_check_branch
      %61 = sbr.rel (0) target = $region53
    $region52: #{manifoldnet_forward.1} parent=1 // pred_region
      _
    $region53: #{manifoldnet_forward.1} parent=1 // pred_fallthru
      _
    // Predicated region
    $region54: #{manifoldnet_forward.1} parent=1 // pred_check
      _
    $region55: #{manifoldnet_forward.1} parent=1 // pred_check_branch
      %63 = sbr.rel (0) target = $region57
    $region56: #{manifoldnet_forward.1} parent=1 // pred_region
      _
    $region57: #{manifoldnet_forward.1} parent=1 // pred_fallthru
      _
    // Predicated region
    $region58: #{manifoldnet_forward.1} parent=1 // pred_check
      _
    $region59: #{manifoldnet_forward.1} parent=1 // pred_check_branch
      %65 = sbr.rel (0) target = $region61
    $region60: #{manifoldnet_forward.1} parent=1 // pred_region
      %s67 = ssub.s32 1024, 1024
      %68 = vsyncadd [#allocation5], %s67
      %s69 = sshll.u32 [#allocation4], 4
      %s70 = int_to_ptr.vmem [resolvable:$true] %s69
      %75 = dma.hbm_to_vmem [thread:$0]  %s14, 1024, %s70, [#allocation5], 64, 64, 4
    $region61: #{manifoldnet_forward.1} parent=1 // pred_fallthru
      _
    // Predicated region
    $region62: #{manifoldnet_forward.1} parent=1 // pred_check
      _
    $region63: #{manifoldnet_forward.1} parent=1 // pred_check_branch
      %77 = sbr.rel (0) target = $region65
    $region64: #{manifoldnet_forward.1} parent=1 // pred_region
      _
    $region65: #{manifoldnet_forward.1} parent=1 // pred_fallthru
      _
    // Predicated region
    $region66: #{manifoldnet_forward.1} parent=1 // pred_check
      _
    $region67: #{manifoldnet_forward.1} parent=1 // pred_check_branch
      %79 = sbr.rel (0) target = $region69
    $region68: #{manifoldnet_forward.1} parent=1 // pred_region
      _
    $region69: #{manifoldnet_forward.1} parent=1 // pred_fallthru
      _
    // Predicated region
    $region70: #{manifoldnet_forward.1} parent=1 // pred_check
      _
    $region71: #{manifoldnet_forward.1} parent=1 // pred_check_branch
      %81 = sbr.rel (0) target = $region73
    $region72: #{manifoldnet_forward.1} parent=1 // pred_region
      _
    $region73: #{manifoldnet_forward.1} parent=1 // pred_fallthru
      _
    // Predicated region
    $region74: #{manifoldnet_forward.1} parent=1 // pred_check
      _
    $region75: #{manifoldnet_forward.1} parent=1 // pred_check_branch
      %83 = sbr.rel (0) target = $region77
    $region76: #{manifoldnet_forward.1} parent=1 // pred_region
      _
    $region77: #{manifoldnet_forward.1} parent=1 // pred_fallthru
      _
    // Predicated region
    $region78: #{manifoldnet_forward.1} parent=1 // pred_check
      _
    $region79: #{manifoldnet_forward.1} parent=1 // pred_check_branch
      %85 = sbr.rel (0) target = $region81
    $region80: #{manifoldnet_forward.1} parent=1 // pred_region
      %86 = dma.done [#allocation3], 5120
    $region81: #{manifoldnet_forward.1} parent=1 // pred_fallthru
      _
    // Predicated region
    $region82: #{manifoldnet_forward.1} parent=1 // pred_check
      _
    $region83: #{manifoldnet_forward.1} parent=1 // pred_check_branch
      %88 = sbr.rel (0) target = $region85
    $region84: #{manifoldnet_forward.1} parent=1 // pred_region
      %89 = dma.done [#allocation5], 1024
    $region85: #{manifoldnet_forward.1} parent=1 // pred_fallthru
      _
    %v91 = vld [vmem:[%s0] sm:$0xff]
    %v92 = vld [vmem:[%s0 + $0x8] sm:$0xff]
    %v93 = vld [vmem:[%s0 + $0x10] sm:$0xff]
    %v94 = vld [vmem:[%s0 + $0x18] sm:$0xff]
    %v95 = vld [vmem:[%s0 + $0x20] sm:$0xff]
    %v96 = vld [vmem:[%s0 + $0x28] sm:$0xff]
    %v97 = vld [vmem:[%s0 + $0x30] sm:$0xff]
    %v98 = vld [vmem:[%s0 + $0x38] sm:$0xff]
    %v99 = vld [vmem:[%s0 + $0x40] sm:$0xff]
    %v100 = vld [vmem:[%s0 + $0x48] sm:$0xff]
    %v101 = vld [vmem:[%s0 + $0x50] sm:$0xff]
    %v102 = vld [vmem:[%s0 + $0x58] sm:$0xff]
    %v103 = vld [vmem:[%s0 + $0x60] sm:$0xff]
    %v104 = vld [vmem:[%s0 + $0x68] sm:$0xff]
    %v105 = vld [vmem:[%s0 + $0x70] sm:$0xff]
    %v106 = vld [vmem:[%s0 + $0x78] sm:$0xff]
    %v107 = vpack.c.bf16 %v92, %v91
    %v108 = vpack.c.bf16 %v94, %v93
    %v109 = vpack.c.bf16 %v96, %v95
    %v110 = vpack.c.bf16 %v98, %v97
    %v111 = vpack.c.bf16 %v100, %v99
    %v112 = vpack.c.bf16 %v102, %v101
    %v113 = vpack.c.bf16 %v104, %v103
    %v114 = vpack.c.bf16 %v106, %v105
    %v115 = vld [vmem:[%s1] sm:$0xf]
    %vm116 = vcmask 64512
    %v118 = vsel %vm116, %v107, 0
    %v121 = vsel %vm116, %v108, 0
    %v124 = vsel %vm116, %v109, 0
    %v127 = vsel %vm116, %v110, 0
    %v130 = vsel %vm116, %v111, 0
    %v133 = vsel %vm116, %v112, 0
    %v136 = vsel %vm116, %v113, 0
    %v139 = vsel %vm116, %v114, 0
    %vm141 = vcmask 1043456
    %v143 = vsel %vm141, %v115, 0
    %145 = vmatprep.subr.bf16.mxu0 0
    %146 = vmatpush1.bf16.msra.mxu0 %v143
    %147 = vmatprep.subr.bf16.mxu0 0
    %148 = vmatpush1.bf16.msra.mxu0 0
    %149 = vmatprep.subr.bf16.mxu0 0
    %150 = vmatpush1.bf16.msra.mxu0 0
    %151 = vmatprep.subr.bf16.mxu0 0
    %152 = vmatpush1.bf16.msra.mxu0 0
    %153 = vmatprep.subr.bf16.mxu0 0
    %154 = vmatpush1.bf16.msra.mxu0 0
    %155 = vmatprep.subr.bf16.mxu0 0
    %156 = vmatpush1.bf16.msra.mxu0 0
    %157 = vmatprep.subr.bf16.mxu0 0
    %158 = vmatpush1.bf16.msra.mxu0 0
    %159 = vmatprep.subr.bf16.mxu0 0
    %160 = vmatpush1.bf16.msra.mxu0 0
    %161 = vmatprep.subr.bf16.mxu0 0
    %162 = vmatpush1.bf16.msra.mxu0 0
    %163 = vmatprep.subr.bf16.mxu0 0
    %164 = vmatpush1.bf16.msra.mxu0 0
    %165 = vmatprep.subr.bf16.mxu0 0
    %166 = vmatpush1.bf16.msra.mxu0 0
    %167 = vmatprep.subr.bf16.mxu0 0
    %168 = vmatpush1.bf16.msra.mxu0 0
    %169 = vmatprep.subr.bf16.mxu0 0
    %170 = vmatpush1.bf16.msra.mxu0 0
    %171 = vmatprep.subr.bf16.mxu0 0
    %172 = vmatpush1.bf16.msra.mxu0 0
    %173 = vmatprep.subr.bf16.mxu0 0
    %174 = vmatpush1.bf16.msra.mxu0 0
    %175 = vmatprep.subr.bf16.mxu0 0
    %176 = vmatpush1.bf16.msra.mxu0 0
    %177 = vmatprep.mubr.bf16.mxu0 0
    %178 = vmatmul.mubr.bf16.gmra.mrb[0].mxu0 %v118
    %v179 = vpop.f32.mrb[0].mxu0
    %v180 = vadd.f32 0.0, %v179
    %v181 = vpop.f32.mrb[0].mxu0
    %v182 = vpop.f32.mrb[0].mxu0
    %v183 = vadd.f32 0.0, %v182
    %v184 = vpop.f32.mrb[0].mxu0
    %185 = vmatprep.mubr.bf16.mxu0 0
    %186 = vmatmul.mubr.bf16.gmra.mrb[0].mxu0 %v121
    %v187 = vpop.f32.mrb[0].mxu0
    %v188 = vadd.f32 0.0, %v187
    %v189 = vpop.f32.mrb[0].mxu0
    %v190 = vpop.f32.mrb[0].mxu0
    %v191 = vadd.f32 0.0, %v190
    %v192 = vpop.f32.mrb[0].mxu0
    %193 = vmatprep.mubr.bf16.mxu0 0
    %194 = vmatmul.mubr.bf16.gmra.mrb[0].mxu0 %v124
    %v195 = vpop.f32.mrb[0].mxu0
    %v196 = vadd.f32 0.0, %v195
    %v197 = vpop.f32.mrb[0].mxu0
    %v198 = vpop.f32.mrb[0].mxu0
    %v199 = vadd.f32 0.0, %v198
    %v200 = vpop.f32.mrb[0].mxu0
    %201 = vmatprep.mubr.bf16.mxu0 0
    %202 = vmatmul.mubr.bf16.gmra.mrb[0].mxu0 %v127
    %v203 = vpop.f32.mrb[0].mxu0
    %v204 = vadd.f32 0.0, %v203
    %v205 = vpop.f32.mrb[0].mxu0
    %v206 = vpop.f32.mrb[0].mxu0
    %v207 = vadd.f32 0.0, %v206
    %v208 = vpop.f32.mrb[0].mxu0
    %209 = vmatprep.mubr.bf16.mxu0 0
    %210 = vmatmul.mubr.bf16.gmra.mrb[0].mxu0 %v130
    %v211 = vpop.f32.mrb[0].mxu0
    %v212 = vadd.f32 0.0, %v211
    %v213 = vpop.f32.mrb[0].mxu0
    %v214 = vpop.f32.mrb[0].mxu0
    %v215 = vadd.f32 0.0, %v214
    %v216 = vpop.f32.mrb[0].mxu0
    %217 = vmatprep.mubr.bf16.mxu0 0
    %218 = vmatmul.mubr.bf16.gmra.mrb[0].mxu0 %v133
    %v219 = vpop.f32.mrb[0].mxu0
    %v220 = vadd.f32 0.0, %v219
    %v221 = vpop.f32.mrb[0].mxu0
    %v222 = vpop.f32.mrb[0].mxu0
    %v223 = vadd.f32 0.0, %v222
    %v224 = vpop.f32.mrb[0].mxu0
    %225 = vmatprep.mubr.bf16.mxu0 0
    %226 = vmatmul.mubr.bf16.gmra.mrb[0].mxu0 %v136
    %v227 = vpop.f32.mrb[0].mxu0
    %v228 = vadd.f32 0.0, %v227
    %v229 = vpop.f32.mrb[0].mxu0
    %v230 = vpop.f32.mrb[0].mxu0
    %v231 = vadd.f32 0.0, %v230
    %v232 = vpop.f32.mrb[0].mxu0
    %233 = vmatprep.mubr.bf16.mxu0 0
    %234 = vmatmul.mubr.bf16.gmra.mrb[0].mxu0 %v139
    %v235 = vpop.f32.mrb[0].mxu0
    %v236 = vadd.f32 0.0, %v235
    %v237 = vpop.f32.mrb[0].mxu0
    %v238 = vpop.f32.mrb[0].mxu0
    %v239 = vadd.f32 0.0, %v238
    %v240 = vpop.f32.mrb[0].mxu0
    %241 = vdwg.mxu0
    %v242 = vmul.f32 %v180, %v180
    %v243 = vmul.f32 %v183, %v183
    %v244 = vmul.f32 %v188, %v188
    %v245 = vmul.f32 %v191, %v191
    %v246 = vmul.f32 %v196, %v196
    %v247 = vmul.f32 %v199, %v199
    %v248 = vmul.f32 %v204, %v204
    %v249 = vmul.f32 %v207, %v207
    %v250 = vmul.f32 %v212, %v212
    %v251 = vmul.f32 %v215, %v215
    %v252 = vmul.f32 %v220, %v220
    %v253 = vmul.f32 %v223, %v223
    %v254 = vmul.f32 %v228, %v228
    %v255 = vmul.f32 %v231, %v231
    %v256 = vmul.f32 %v236, %v236
    %v257 = vmul.f32 %v239, %v239
    %v258 = vadd.f32 %v242, %v250
    %v259 = vadd.f32 %v243, %v251
    %v260 = vadd.f32 %v244, %v252
    %v261 = vadd.f32 %v245, %v253
    %v262 = vadd.f32 %v246, %v254
    %v263 = vadd.f32 %v247, %v255
    %v264 = vadd.f32 %v248, %v256
    %v265 = vadd.f32 %v249, %v257
    %v266 = vrsqrt.pop %v258
    %v267 = vmul.f32 %v258, %v266
    %vm268 = vcmp.eq.f32.partialorder %v258, inf
    %v269 = vsel %vm268, %v258, %v267
    %vm270 = vcmp.eq.f32.partialorder %v258, 0.0
    %v271 = vand.u32 %v258, 2147483648
    %v272 = vsel %vm270, %v271, %v269
    %v273 = vrsqrt.pop %v259
    %v274 = vmul.f32 %v259, %v273
    %vm275 = vcmp.eq.f32.partialorder %v259, inf
    %v276 = vsel %vm275, %v259, %v274
    %vm277 = vcmp.eq.f32.partialorder %v259, 0.0
    %v278 = vand.u32 %v259, 2147483648
    %v279 = vsel %vm277, %v278, %v276
    %v280 = vrsqrt.pop %v260
    %v281 = vmul.f32 %v260, %v280
    %vm282 = vcmp.eq.f32.partialorder %v260, inf
    %v283 = vsel %vm282, %v260, %v281
    %vm284 = vcmp.eq.f32.partialorder %v260, 0.0
    %v285 = vand.u32 %v260, 2147483648
    %v286 = vsel %vm284, %v285, %v283
    %v287 = vrsqrt.pop %v261
    %v288 = vmul.f32 %v261, %v287
    %vm289 = vcmp.eq.f32.partialorder %v261, inf
    %v290 = vsel %vm289, %v261, %v288
    %vm291 = vcmp.eq.f32.partialorder %v261, 0.0
    %v292 = vand.u32 %v261, 2147483648
    %v293 = vsel %vm291, %v292, %v290
    %v294 = vrsqrt.pop %v262
    %v295 = vmul.f32 %v262, %v294
    %vm296 = vcmp.eq.f32.partialorder %v262, inf
    %v297 = vsel %vm296, %v262, %v295
    %vm298 = vcmp.eq.f32.partialorder %v262, 0.0
    %v299 = vand.u32 %v262, 2147483648
    %v300 = vsel %vm298, %v299, %v297
    %v301 = vrsqrt.pop %v263
    %v302 = vmul.f32 %v263, %v301
    %vm303 = vcmp.eq.f32.partialorder %v263, inf
    %v304 = vsel %vm303, %v263, %v302
    %vm305 = vcmp.eq.f32.partialorder %v263, 0.0
    %v306 = vand.u32 %v263, 2147483648
    %v307 = vsel %vm305, %v306, %v304
    %v308 = vrsqrt.pop %v264
    %v309 = vmul.f32 %v264, %v308
    %vm310 = vcmp.eq.f32.partialorder %v264, inf
    %v311 = vsel %vm310, %v264, %v309
    %vm312 = vcmp.eq.f32.partialorder %v264, 0.0
    %v313 = vand.u32 %v264, 2147483648
    %v314 = vsel %vm312, %v313, %v311
    %v315 = vrsqrt.pop %v265
    %v316 = vmul.f32 %v265, %v315
    %vm317 = vcmp.eq.f32.partialorder %v265, inf
    %v318 = vsel %vm317, %v265, %v316
    %vm319 = vcmp.eq.f32.partialorder %v265, 0.0
    %v320 = vand.u32 %v265, 2147483648
    %v321 = vsel %vm319, %v320, %v318
    %v322 = vld [vmem:[%s2] sm:$0x1]
    %v324 = vlaneseq
    %v325 = vshrl.u32 %v324, 7
    %v326 = vsub.s32 0, %v325
    %v327 = vrot.slane %v322, %v326
    %v329 = vadd.f32 %v272, %v327
    %v330 = vadd.f32 %v279, %v327
    %v331 = vadd.f32 %v286, %v327
    %v332 = vadd.f32 %v293, %v327
    %v333 = vadd.f32 %v300, %v327
    %v334 = vadd.f32 %v307, %v327
    %v335 = vadd.f32 %v314, %v327
    %v336 = vadd.f32 %v321, %v327
    %v337 = vmax.f32 %v329, 0.0
    %v338 = vmax.f32 %v330, 0.0
    %v339 = vmax.f32 %v331, 0.0
    %v340 = vmax.f32 %v332, 0.0
    %v341 = vmax.f32 %v333, 0.0
    %v342 = vmax.f32 %v334, 0.0
    %v343 = vmax.f32 %v335, 0.0
    %v344 = vmax.f32 %v336, 0.0
    %vm354 = vcmask 1046528
    %v355 = vrot.slane %v337, 1
    %v356 = vrot.slane %v338, 1
    %v357 = vsel %vm354, %v355, %v356
    %v358 = vrot.slane %v339, 1
    %v359 = vsel %vm354, %v356, %v358
    %v360 = vrot.slane %v340, 1
    %v361 = vsel %vm354, %v358, %v360
    %v362 = vrot.slane %v341, 1
    %v363 = vsel %vm354, %v360, %v362
    %v364 = vrot.slane %v342, 1
    %v365 = vsel %vm354, %v362, %v364
    %v366 = vrot.slane %v343, 1
    %v367 = vsel %vm354, %v364, %v366
    %v368 = vrot.slane %v344, 1
    %v369 = vsel %vm354, %v366, %v368
    %v370 = vrot.slane 0.0, 1
    %v371 = vsel %vm354, %v368, %v370
    %vm380 = vcmask 1045504
    %v381 = vrot.slane %v337, 2
    %v382 = vrot.slane %v338, 2
    %v383 = vsel %vm380, %v381, %v382
    %v384 = vrot.slane %v339, 2
    %v385 = vsel %vm380, %v382, %v384
    %v386 = vrot.slane %v340, 2
    %v387 = vsel %vm380, %v384, %v386
    %v388 = vrot.slane %v341, 2
    %v389 = vsel %vm380, %v386, %v388
    %v390 = vrot.slane %v342, 2
    %v391 = vsel %vm380, %v388, %v390
    %v392 = vrot.slane %v343, 2
    %v393 = vsel %vm380, %v390, %v392
    %v394 = vrot.slane %v344, 2
    %v395 = vsel %vm380, %v392, %v394
    %v396 = vrot.slane 0.0, 2
    %v397 = vsel %vm380, %v394, %v396
    %vm406 = vcmask 1044480
    %v407 = vrot.slane %v337, 3
    %v408 = vrot.slane %v338, 3
    %v409 = vsel %vm406, %v407, %v408
    %v410 = vrot.slane %v339, 3
    %v411 = vsel %vm406, %v408, %v410
    %v412 = vrot.slane %v340, 3
    %v413 = vsel %vm406, %v410, %v412
    %v414 = vrot.slane %v341, 3
    %v415 = vsel %vm406, %v412, %v414
    %v416 = vrot.slane %v342, 3
    %v417 = vsel %vm406, %v414, %v416
    %v418 = vrot.slane %v343, 3
    %v419 = vsel %vm406, %v416, %v418
    %v420 = vrot.slane %v344, 3
    %v421 = vsel %vm406, %v418, %v420
    %v422 = vrot.slane 0.0, 3
    %v423 = vsel %vm406, %v420, %v422
    %v432 = vrot.slane %v337, 4
    %v433 = vrot.slane %v338, 4
    %v434 = vsel %vm141, %v432, %v433
    %v435 = vrot.slane %v339, 4
    %v436 = vsel %vm141, %v433, %v435
    %v437 = vrot.slane %v340, 4
    %v438 = vsel %vm141, %v435, %v437
    %v439 = vrot.slane %v341, 4
    %v440 = vsel %vm141, %v437, %v439
    %v441 = vrot.slane %v342, 4
    %v442 = vsel %vm141, %v439, %v441
    %v443 = vrot.slane %v343, 4
    %v444 = vsel %vm141, %v441, %v443
    %v445 = vrot.slane %v344, 4
    %v446 = vsel %vm141, %v443, %v445
    %v447 = vrot.slane 0.0, 4
    %v448 = vsel %vm141, %v445, %v447
    %v457 = vpack.c.bf16 %v338, %v337
    %v458 = vpack.c.bf16 %v359, %v357
    %v459 = vpack.c.bf16 %v385, %v383
    %v460 = vpack.c.bf16 %v411, %v409
    %v461 = vpack.c.bf16 %v436, %v434
    %v462 = vpack.c.bf16 %v340, %v339
    %v463 = vpack.c.bf16 %v363, %v361
    %v464 = vpack.c.bf16 %v389, %v387
    %v465 = vpack.c.bf16 %v415, %v413
    %v466 = vpack.c.bf16 %v440, %v438
    %v467 = vpack.c.bf16 %v342, %v341
    %v468 = vpack.c.bf16 %v367, %v365
    %v469 = vpack.c.bf16 %v393, %v391
    %v470 = vpack.c.bf16 %v419, %v417
    %v471 = vpack.c.bf16 %v444, %v442
    %v472 = vpack.c.bf16 %v344, %v343
    %v473 = vpack.c.bf16 %v371, %v369
    %v474 = vpack.c.bf16 %v397, %v395
    %v475 = vpack.c.bf16 %v423, %v421
    %v476 = vpack.c.bf16 %v448, %v446
    %v477 = vld [vmem:[%s3] sm:$0xf]
    %v478 = vld [vmem:[%s3 + $0x4] sm:$0xf]
    %v479 = vld [vmem:[%s3 + $0x8] sm:$0xf]
    %v480 = vld [vmem:[%s3 + $0xc] sm:$0xf]
    %v481 = vld [vmem:[%s3 + $0x10] sm:$0xf]
    %v482 = vld [vmem:[%s3 + $0x14] sm:$0xf]
    %v483 = vld [vmem:[%s3 + $0x18] sm:$0xf]
    %v484 = vld [vmem:[%s3 + $0x1c] sm:$0xf]
    %v485 = vld [vmem:[%s3 + $0x20] sm:$0xf]
    %v486 = vld [vmem:[%s3 + $0x24] sm:$0xf]
    %v487 = vld [vmem:[%s3 + $0x28] sm:$0xf]
    %v488 = vld [vmem:[%s3 + $0x2c] sm:$0xf]
    %v489 = vld [vmem:[%s3 + $0x30] sm:$0xf]
    %v490 = vld [vmem:[%s3 + $0x34] sm:$0xf]
    %v491 = vld [vmem:[%s3 + $0x38] sm:$0xf]
    %v492 = vld [vmem:[%s3 + $0x3c] sm:$0xf]
    %v493 = vld [vmem:[%s3 + $0x40] sm:$0xf]
    %v494 = vld [vmem:[%s3 + $0x44] sm:$0xf]
    %v495 = vld [vmem:[%s3 + $0x48] sm:$0xf]
    %v496 = vld [vmem:[%s3 + $0x4c] sm:$0xf]
    %v497 = vld [vmem:[%s3 + $0x50] sm:$0xf]
    %v498 = vld [vmem:[%s3 + $0x54] sm:$0xf]
    %v499 = vld [vmem:[%s3 + $0x58] sm:$0xf]
    %v500 = vld [vmem:[%s3 + $0x5c] sm:$0xf]
    %v501 = vld [vmem:[%s3 + $0x60] sm:$0xf]
    %v502 = vld [vmem:[%s3 + $0x64] sm:$0xf]
    %v503 = vld [vmem:[%s3 + $0x68] sm:$0xf]
    %v504 = vld [vmem:[%s3 + $0x6c] sm:$0xf]
    %v505 = vld [vmem:[%s3 + $0x70] sm:$0xf]
    %v506 = vld [vmem:[%s3 + $0x74] sm:$0xf]
    %v507 = vld [vmem:[%s3 + $0x78] sm:$0xf]
    %v508 = vld [vmem:[%s3 + $0x7c] sm:$0xf]
    %v509 = vld [vmem:[%s3 + $0x80] sm:$0xf]
    %v510 = vld [vmem:[%s3 + $0x84] sm:$0xf]
    %v511 = vld [vmem:[%s3 + $0x88] sm:$0xf]
    %v512 = vld [vmem:[%s3 + $0x8c] sm:$0xf]
    %v513 = vld [vmem:[%s3 + $0x90] sm:$0xf]
    %v514 = vld [vmem:[%s3 + $0x94] sm:$0xf]
    %v515 = vld [vmem:[%s3 + $0x98] sm:$0xf]
    %v516 = vld [vmem:[%s3 + $0x9c] sm:$0xf]
    %v517 = vld [vmem:[%s3 + $0xa0] sm:$0xf]
    %v518 = vld [vmem:[%s3 + $0xa4] sm:$0xf]
    %v519 = vld [vmem:[%s3 + $0xa8] sm:$0xf]
    %v520 = vld [vmem:[%s3 + $0xac] sm:$0xf]
    %v521 = vld [vmem:[%s3 + $0xb0] sm:$0xf]
    %v522 = vld [vmem:[%s3 + $0xb4] sm:$0xf]
    %v523 = vld [vmem:[%s3 + $0xb8] sm:$0xf]
    %v524 = vld [vmem:[%s3 + $0xbc] sm:$0xf]
    %v525 = vld [vmem:[%s3 + $0xc0] sm:$0xf]
    %v526 = vld [vmem:[%s3 + $0xc4] sm:$0xf]
    %v527 = vld [vmem:[%s3 + $0xc8] sm:$0xf]
    %v528 = vld [vmem:[%s3 + $0xcc] sm:$0xf]
    %v529 = vld [vmem:[%s3 + $0xd0] sm:$0xf]
    %v530 = vld [vmem:[%s3 + $0xd4] sm:$0xf]
    %v531 = vld [vmem:[%s3 + $0xd8] sm:$0xf]
    %v532 = vld [vmem:[%s3 + $0xdc] sm:$0xf]
    %v533 = vld [vmem:[%s3 + $0xe0] sm:$0xf]
    %v534 = vld [vmem:[%s3 + $0xe4] sm:$0xf]
    %v535 = vld [vmem:[%s3 + $0xe8] sm:$0xf]
    %v536 = vld [vmem:[%s3 + $0xec] sm:$0xf]
    %v537 = vld [vmem:[%s3 + $0xf0] sm:$0xf]
    %v538 = vld [vmem:[%s3 + $0xf4] sm:$0xf]
    %v539 = vld [vmem:[%s3 + $0xf8] sm:$0xf]
    %v540 = vld [vmem:[%s3 + $0xfc] sm:$0xf]
    %v541 = vld [vmem:[%s3 + $0x100] sm:$0xf]
    %v542 = vld [vmem:[%s3 + $0x104] sm:$0xf]
    %v543 = vld [vmem:[%s3 + $0x108] sm:$0xf]
    %v544 = vld [vmem:[%s3 + $0x10c] sm:$0xf]
    %v545 = vld [vmem:[%s3 + $0x110] sm:$0xf]
    %v546 = vld [vmem:[%s3 + $0x114] sm:$0xf]
    %v547 = vld [vmem:[%s3 + $0x118] sm:$0xf]
    %v548 = vld [vmem:[%s3 + $0x11c] sm:$0xf]
    %v549 = vld [vmem:[%s3 + $0x120] sm:$0xf]
    %v550 = vld [vmem:[%s3 + $0x124] sm:$0xf]
    %v551 = vld [vmem:[%s3 + $0x128] sm:$0xf]
    %v552 = vld [vmem:[%s3 + $0x12c] sm:$0xf]
    %v553 = vld [vmem:[%s3 + $0x130] sm:$0xf]
    %v554 = vld [vmem:[%s3 + $0x134] sm:$0xf]
    %v555 = vld [vmem:[%s3 + $0x138] sm:$0xf]
    %v556 = vld [vmem:[%s3 + $0x13c] sm:$0xf]
    %v637 = vunpack.c.l.b16 %v477
    %v638 = vunpack.c.l.b16 %v478
    %v639 = vunpack.c.l.b16 %v479
    %v640 = vunpack.c.l.b16 %v480
    %v641 = vunpack.c.l.b16 %v481
    %v642 = vunpack.c.l.b16 %v482
    %v643 = vunpack.c.l.b16 %v483
    %v644 = vunpack.c.l.b16 %v484
    %v645 = vunpack.c.l.b16 %v485
    %v646 = vunpack.c.l.b16 %v486
    %v647 = vunpack.c.l.b16 %v487
    %v648 = vunpack.c.l.b16 %v488
    %v649 = vunpack.c.l.b16 %v489
    %v650 = vunpack.c.l.b16 %v490
    %v651 = vunpack.c.l.b16 %v491
    %v652 = vunpack.c.l.b16 %v492
    %v653 = vunpack.c.l.b16 %v493
    %v654 = vunpack.c.l.b16 %v494
    %v655 = vunpack.c.l.b16 %v495
    %v656 = vunpack.c.l.b16 %v496
    %v657 = vunpack.c.l.b16 %v497
    %v658 = vunpack.c.l.b16 %v498
    %v659 = vunpack.c.l.b16 %v499
    %v660 = vunpack.c.l.b16 %v500
    %v661 = vunpack.c.l.b16 %v501
    %v662 = vunpack.c.l.b16 %v502
    %v663 = vunpack.c.l.b16 %v503
    %v664 = vunpack.c.l.b16 %v504
    %v665 = vunpack.c.l.b16 %v505
    %v666 = vunpack.c.l.b16 %v506
    %v667 = vunpack.c.l.b16 %v507
    %v668 = vunpack.c.l.b16 %v508
    %v669 = vunpack.c.l.b16 %v509
    %v670 = vunpack.c.l.b16 %v510
    %v671 = vunpack.c.l.b16 %v511
    %v672 = vunpack.c.l.b16 %v512
    %v673 = vunpack.c.l.b16 %v513
    %v674 = vunpack.c.l.b16 %v514
    %v675 = vunpack.c.l.b16 %v515
    %v676 = vunpack.c.l.b16 %v516
    %v677 = vunpack.c.l.b16 %v517
    %v678 = vunpack.c.l.b16 %v518
    %v679 = vunpack.c.l.b16 %v519
    %v680 = vunpack.c.l.b16 %v520
    %v681 = vunpack.c.l.b16 %v521
    %v682 = vunpack.c.l.b16 %v522
    %v683 = vunpack.c.l.b16 %v523
    %v684 = vunpack.c.l.b16 %v524
    %v685 = vunpack.c.l.b16 %v525
    %v686 = vunpack.c.l.b16 %v526
    %v687 = vunpack.c.l.b16 %v527
    %v688 = vunpack.c.l.b16 %v528
    %v689 = vunpack.c.l.b16 %v529
    %v690 = vunpack.c.l.b16 %v530
    %v691 = vunpack.c.l.b16 %v531
    %v692 = vunpack.c.l.b16 %v532
    %v693 = vunpack.c.l.b16 %v533
    %v694 = vunpack.c.l.b16 %v534
    %v695 = vunpack.c.l.b16 %v535
    %v696 = vunpack.c.l.b16 %v536
    %v697 = vunpack.c.l.b16 %v537
    %v698 = vunpack.c.l.b16 %v538
    %v699 = vunpack.c.l.b16 %v539
    %v700 = vunpack.c.l.b16 %v540
    %v701 = vunpack.c.l.b16 %v541
    %v702 = vunpack.c.l.b16 %v542
    %v703 = vunpack.c.l.b16 %v543
    %v704 = vunpack.c.l.b16 %v544
    %v705 = vunpack.c.l.b16 %v545
    %v706 = vunpack.c.l.b16 %v546
    %v707 = vunpack.c.l.b16 %v547
    %v708 = vunpack.c.l.b16 %v548
    %v709 = vunpack.c.l.b16 %v549
    %v710 = vunpack.c.l.b16 %v550
    %v711 = vunpack.c.l.b16 %v551
    %v712 = vunpack.c.l.b16 %v552
    %v713 = vunpack.c.l.b16 %v553
    %v714 = vunpack.c.l.b16 %v554
    %v715 = vunpack.c.l.b16 %v555
    %v716 = vunpack.c.l.b16 %v556
    %v717 = vpack.c.b16 %v638, %v637
    %v718 = vpack.c.b16 %v640, %v639
    %v719 = vpack.c.b16 %v642, %v641
    %v720 = vpack.c.b16 %v644, %v643
    %v721 = vpack.c.b16 %v646, %v645
    %v722 = vpack.c.b16 %v648, %v647
    %v723 = vpack.c.b16 %v650, %v649
    %v724 = vpack.c.b16 %v652, %v651
    %v725 = vpack.c.b16 %v654, %v653
    %v726 = vpack.c.b16 %v656, %v655
    %v727 = vpack.c.b16 %v658, %v657
    %v728 = vpack.c.b16 %v660, %v659
    %v729 = vpack.c.b16 %v662, %v661
    %v730 = vpack.c.b16 %v664, %v663
    %v731 = vpack.c.b16 %v666, %v665
    %v732 = vpack.c.b16 %v668, %v667
    %v733 = vpack.c.b16 %v670, %v669
    %v734 = vpack.c.b16 %v672, %v671
    %v735 = vpack.c.b16 %v674, %v673
    %v736 = vpack.c.b16 %v676, %v675
    %v737 = vpack.c.b16 %v678, %v677
    %v738 = vpack.c.b16 %v680, %v679
    %v739 = vpack.c.b16 %v682, %v681
    %v740 = vpack.c.b16 %v684, %v683
    %v741 = vpack.c.b16 %v686, %v685
    %v742 = vpack.c.b16 %v688, %v687
    %v743 = vpack.c.b16 %v690, %v689
    %v744 = vpack.c.b16 %v692, %v691
    %v745 = vpack.c.b16 %v694, %v693
    %v746 = vpack.c.b16 %v696, %v695
    %v747 = vpack.c.b16 %v698, %v697
    %v748 = vpack.c.b16 %v700, %v699
    %v749 = vpack.c.b16 %v702, %v701
    %v750 = vpack.c.b16 %v704, %v703
    %v751 = vpack.c.b16 %v706, %v705
    %v752 = vpack.c.b16 %v708, %v707
    %v753 = vpack.c.b16 %v710, %v709
    %v754 = vpack.c.b16 %v712, %v711
    %v755 = vpack.c.b16 %v714, %v713
    %v756 = vpack.c.b16 %v716, %v715
    %797 = vmatprep.subr.bf16.mxu0 0
    %798 = vmatpush1.bf16.msra.mxu0 %v717
    %799 = vmatprep.subr.bf16.mxu0 0
    %800 = vmatpush1.bf16.msra.mxu0 %v718
    %801 = vmatprep.subr.bf16.mxu0 0
    %802 = vmatpush1.bf16.msra.mxu0 %v719
    %803 = vmatprep.subr.bf16.mxu0 0
    %804 = vmatpush1.bf16.msra.mxu0 %v720
    %805 = vmatprep.subr.bf16.mxu0 0
    %806 = vmatpush1.bf16.msra.mxu0 %v721
    %807 = vmatprep.subr.bf16.mxu0 0
    %808 = vmatpush1.bf16.msra.mxu0 %v722
    %809 = vmatprep.subr.bf16.mxu0 0
    %810 = vmatpush1.bf16.msra.mxu0 %v723
    %811 = vmatprep.subr.bf16.mxu0 0
    %812 = vmatpush1.bf16.msra.mxu0 %v724
    %813 = vmatprep.subr.bf16.mxu0 0
    %814 = vmatpush1.bf16.msra.mxu0 %v725
    %815 = vmatprep.subr.bf16.mxu0 0
    %816 = vmatpush1.bf16.msra.mxu0 %v726
    %817 = vmatprep.subr.bf16.mxu0 0
    %818 = vmatpush1.bf16.msra.mxu0 %v727
    %819 = vmatprep.subr.bf16.mxu0 0
    %820 = vmatpush1.bf16.msra.mxu0 %v728
    %821 = vmatprep.subr.bf16.mxu0 0
    %822 = vmatpush1.bf16.msra.mxu0 %v729
    %823 = vmatprep.subr.bf16.mxu0 0
    %824 = vmatpush1.bf16.msra.mxu0 %v730
    %825 = vmatprep.subr.bf16.mxu0 0
    %826 = vmatpush1.bf16.msra.mxu0 %v731
    %827 = vmatprep.subr.bf16.mxu0 0
    %828 = vmatpush1.bf16.msra.mxu0 %v732
    %829 = vmatprep.mubr.bf16.mxu0 %v458
    %830 = vmatmul.mubr.bf16.gmra.mrb[0].mxu0 %v457
    %v831 = vpop.f32.mrb[0].mxu0
    %v832 = vadd.f32 0.0, %v831
    %v833 = vpop.f32.mrb[0].mxu0
    %v834 = vpop.f32.mrb[0].mxu0
    %v835 = vadd.f32 0.0, %v834
    %v836 = vpop.f32.mrb[0].mxu0
    %837 = vmatprep.mubr.bf16.mxu0 %v463
    %838 = vmatmul.mubr.bf16.gmra.mrb[0].mxu0 %v462
    %v839 = vpop.f32.mrb[0].mxu0
    %v840 = vadd.f32 0.0, %v839
    %v841 = vpop.f32.mrb[0].mxu0
    %v842 = vpop.f32.mrb[0].mxu0
    %v843 = vadd.f32 0.0, %v842
    %v844 = vpop.f32.mrb[0].mxu0
    %845 = vmatprep.mubr.bf16.mxu0 %v468
    %846 = vmatmul.mubr.bf16.gmra.mrb[0].mxu0 %v467
    %v847 = vpop.f32.mrb[0].mxu0
    %v848 = vadd.f32 0.0, %v847
    %v849 = vpop.f32.mrb[0].mxu0
    %v850 = vpop.f32.mrb[0].mxu0
    %v851 = vadd.f32 0.0, %v850
    %v852 = vpop.f32.mrb[0].mxu0
    %853 = vmatprep.mubr.bf16.mxu0 %v473
    %854 = vmatmul.mubr.bf16.gmra.mrb[0].mxu0 %v472
    %v855 = vpop.f32.mrb[0].mxu0
    %v856 = vadd.f32 0.0, %v855
    %v857 = vpop.f32.mrb[0].mxu0
    %v858 = vpop.f32.mrb[0].mxu0
    %v859 = vadd.f32 0.0, %v858
    %v860 = vpop.f32.mrb[0].mxu0
    %861 = vdwg.mxu0
    %862 = vmatprep.subr.bf16.mxu0 0
    %863 = vmatpush1.bf16.msra.mxu0 %v733
    %864 = vmatprep.subr.bf16.mxu0 0
    %865 = vmatpush1.bf16.msra.mxu0 %v734
    %866 = vmatprep.subr.bf16.mxu0 0
    %867 = vmatpush1.bf16.msra.mxu0 %v735
    %868 = vmatprep.subr.bf16.mxu0 0
    %869 = vmatpush1.bf16.msra.mxu0 %v736
    %870 = vmatprep.subr.bf16.mxu0 0
    %871 = vmatpush1.bf16.msra.mxu0 %v737
    %872 = vmatprep.subr.bf16.mxu0 0
    %873 = vmatpush1.bf16.msra.mxu0 %v738
    %874 = vmatprep.subr.bf16.mxu0 0
    %875 = vmatpush1.bf16.msra.mxu0 %v739
    %876 = vmatprep.subr.bf16.mxu0 0
    %877 = vmatpush1.bf16.msra.mxu0 %v740
    %878 = vmatprep.subr.bf16.mxu0 0
    %879 = vmatpush1.bf16.msra.mxu0 %v741
    %880 = vmatprep.subr.bf16.mxu0 0
    %881 = vmatpush1.bf16.msra.mxu0 %v742
    %882 = vmatprep.subr.bf16.mxu0 0
    %883 = vmatpush1.bf16.msra.mxu0 %v743
    %884 = vmatprep.subr.bf16.mxu0 0
    %885 = vmatpush1.bf16.msra.mxu0 %v744
    %886 = vmatprep.subr.bf16.mxu0 0
    %887 = vmatpush1.bf16.msra.mxu0 %v745
    %888 = vmatprep.subr.bf16.mxu0 0
    %889 = vmatpush1.bf16.msra.mxu0 %v746
    %890 = vmatprep.subr.bf16.mxu0 0
    %891 = vmatpush1.bf16.msra.mxu0 %v747
    %892 = vmatprep.subr.bf16.mxu0 0
    %893 = vmatpush1.bf16.msra.mxu0 %v748
    %894 = vmatprep.mubr.bf16.mxu0 %v460
    %895 = vmatmul.mubr.bf16.gmra.mrb[0].mxu0 %v459
    %v896 = vpop.f32.mrb[0].mxu0
    %v897 = vadd.f32 %v832, %v896
    %v898 = vpop.f32.mrb[0].mxu0
    %v899 = vpop.f32.mrb[0].mxu0
    %v900 = vadd.f32 %v835, %v899
    %v901 = vpop.f32.mrb[0].mxu0
    %902 = vmatprep.mubr.bf16.mxu0 %v465
    %903 = vmatmul.mubr.bf16.gmra.mrb[0].mxu0 %v464
    %v904 = vpop.f32.mrb[0].mxu0
    %v905 = vadd.f32 %v840, %v904
    %v906 = vpop.f32.mrb[0].mxu0
    %v907 = vpop.f32.mrb[0].mxu0
    %v908 = vadd.f32 %v843, %v907
    %v909 = vpop.f32.mrb[0].mxu0
    %910 = vmatprep.mubr.bf16.mxu0 %v470
    %911 = vmatmul.mubr.bf16.gmra.mrb[0].mxu0 %v469
    %v912 = vpop.f32.mrb[0].mxu0
    %v913 = vadd.f32 %v848, %v912
    %v914 = vpop.f32.mrb[0].mxu0
    %v915 = vpop.f32.mrb[0].mxu0
    %v916 = vadd.f32 %v851, %v915
    %v917 = vpop.f32.mrb[0].mxu0
    %918 = vmatprep.mubr.bf16.mxu0 %v475
    %919 = vmatmul.mubr.bf16.gmra.mrb[0].mxu0 %v474
    %v920 = vpop.f32.mrb[0].mxu0
    %v921 = vadd.f32 %v856, %v920
    %v922 = vpop.f32.mrb[0].mxu0
    %v923 = vpop.f32.mrb[0].mxu0
    %v924 = vadd.f32 %v859, %v923
    %v925 = vpop.f32.mrb[0].mxu0
    %926 = vdwg.mxu0
    %927 = vmatprep.subr.bf16.mxu0 0
    %928 = vmatpush1.bf16.msra.mxu0 %v749
    %929 = vmatprep.subr.bf16.mxu0 0
    %930 = vmatpush1.bf16.msra.mxu0 %v750
    %931 = vmatprep.subr.bf16.mxu0 0
    %932 = vmatpush1.bf16.msra.mxu0 %v751
    %933 = vmatprep.subr.bf16.mxu0 0
    %934 = vmatpush1.bf16.msra.mxu0 %v752
    %935 = vmatprep.subr.bf16.mxu0 0
    %936 = vmatpush1.bf16.msra.mxu0 %v753
    %937 = vmatprep.subr.bf16.mxu0 0
    %938 = vmatpush1.bf16.msra.mxu0 %v754
    %939 = vmatprep.subr.bf16.mxu0 0
    %940 = vmatpush1.bf16.msra.mxu0 %v755
    %941 = vmatprep.subr.bf16.mxu0 0
    %942 = vmatpush1.bf16.msra.mxu0 %v756
    %943 = vmatprep.subr.bf16.mxu0 0
    %944 = vmatpush1.bf16.msra.mxu0 0
    %945 = vmatprep.subr.bf16.mxu0 0
    %946 = vmatpush1.bf16.msra.mxu0 0
    %947 = vmatprep.subr.bf16.mxu0 0
    %948 = vmatpush1.bf16.msra.mxu0 0
    %949 = vmatprep.subr.bf16.mxu0 0
    %950 = vmatpush1.bf16.msra.mxu0 0
    %951 = vmatprep.subr.bf16.mxu0 0
    %952 = vmatpush1.bf16.msra.mxu0 0
    %953 = vmatprep.subr.bf16.mxu0 0
    %954 = vmatpush1.bf16.msra.mxu0 0
    %955 = vmatprep.subr.bf16.mxu0 0
    %956 = vmatpush1.bf16.msra.mxu0 0
    %957 = vmatprep.subr.bf16.mxu0 0
    %958 = vmatpush1.bf16.msra.mxu0 0
    %959 = vmatprep.mubr.bf16.mxu0 0
    %960 = vmatmul.mubr.bf16.gmra.mrb[0].mxu0 %v461
    %v961 = vpop.f32.mrb[0].mxu0
    %v962 = vadd.f32 %v897, %v961
    %v963 = vpop.f32.mrb[0].mxu0
    %v964 = vpop.f32.mrb[0].mxu0
    %v965 = vadd.f32 %v900, %v964
    %v966 = vpop.f32.mrb[0].mxu0
    %967 = vmatprep.mubr.bf16.mxu0 0
    %968 = vmatmul.mubr.bf16.gmra.mrb[0].mxu0 %v466
    %v969 = vpop.f32.mrb[0].mxu0
    %v970 = vadd.f32 %v905, %v969
    %v971 = vpop.f32.mrb[0].mxu0
    %v972 = vpop.f32.mrb[0].mxu0
    %v973 = vadd.f32 %v908, %v972
    %v974 = vpop.f32.mrb[0].mxu0
    %975 = vmatprep.mubr.bf16.mxu0 0
    %976 = vmatmul.mubr.bf16.gmra.mrb[0].mxu0 %v471
    %v977 = vpop.f32.mrb[0].mxu0
    %v978 = vadd.f32 %v913, %v977
    %v979 = vpop.f32.mrb[0].mxu0
    %v980 = vpop.f32.mrb[0].mxu0
    %v981 = vadd.f32 %v916, %v980
    %v982 = vpop.f32.mrb[0].mxu0
    %983 = vmatprep.mubr.bf16.mxu0 0
    %984 = vmatmul.mubr.bf16.gmra.mrb[0].mxu0 %v476
    %v985 = vpop.f32.mrb[0].mxu0
    %v986 = vadd.f32 %v921, %v985
    %v987 = vpop.f32.mrb[0].mxu0
    %v988 = vpop.f32.mrb[0].mxu0
    %v989 = vadd.f32 %v924, %v988
    %v990 = vpop.f32.mrb[0].mxu0
    %991 = vdwg.mxu0
    %v992 = vlaneseq
    %v993 = vshrl.u32 %v992, 7
    %v994 = vadd.s32 %v993, 8
    %v995 = vadd.s32 %v993, 16
    %v996 = vadd.s32 %v993, 24
    %v997 = vadd.s32 %v993, 32
    %v998 = vadd.s32 %v993, 40
    %v999 = vadd.s32 %v993, 48
    %v1000 = vadd.s32 %v993, 56
    %v1001 = vand.u32 %v993, 31
    %v1002 = vand.u32 %v994, 31
    %v1003 = vand.u32 %v995, 31
    %v1004 = vand.u32 %v996, 31
    %v1005 = vand.u32 %v997, 31
    %v1006 = vand.u32 %v998, 31
    %v1007 = vand.u32 %v999, 31
    %v1008 = vand.u32 %v1000, 31
    %vm1009 = vcmp.lt.s32.totalorder %v1001, 21
    %vm1010 = vcmp.lt.s32.totalorder %v1002, 21
    %vm1011 = vcmp.lt.s32.totalorder %v1003, 21
    %vm1012 = vcmp.lt.s32.totalorder %v1004, 21
    %vm1013 = vcmp.lt.s32.totalorder %v1005, 21
    %vm1014 = vcmp.lt.s32.totalorder %v1006, 21
    %vm1015 = vcmp.lt.s32.totalorder %v1007, 21
    %vm1016 = vcmp.lt.s32.totalorder %v1008, 21
    %v1017 = vsel %vm1009, %v962, 0.0
    %v1018 = vsel %vm1010, %v965, 0.0
    %v1019 = vsel %vm1011, %v970, 0.0
    %v1020 = vsel %vm1012, %v973, 0.0
    %v1021 = vsel %vm1013, %v978, 0.0
    %v1022 = vsel %vm1014, %v981, 0.0
    %v1023 = vsel %vm1015, %v986, 0.0
    %v1024 = vsel %vm1016, %v989, 0.0
    %v1025 = vadd.f32 %v1017, %v1018
    %v1026 = vadd.f32 %v1025, %v1019
    %v1027 = vadd.f32 %v1026, %v1020
    %v1028 = vadd.f32 %v1027, %v1021
    %v1029 = vadd.f32 %v1028, %v1022
    %v1030 = vadd.f32 %v1029, %v1023
    %v1031 = vadd.f32 %v1030, %v1024
    %v1032 = vrot.slane %v1031, 4
    %v1033 = vadd.f32 %v1031, %v1032
    %v1034 = vrot.slane %v1033, 2
    %v1035 = vadd.f32 %v1033, %v1034
    %v1036 = vrot.slane %v1035, 1
    %v1037 = vadd.f32 %v1035, %v1036
    %v1038 = vmul.f32 %v1037, 0.023809524
    %v1039 = vmul.f32 %v1017, %v1017
    %v1040 = vmul.f32 %v1018, %v1018
    %v1041 = vmul.f32 %v1019, %v1019
    %v1042 = vmul.f32 %v1020, %v1020
    %v1043 = vmul.f32 %v1021, %v1021
    %v1044 = vmul.f32 %v1022, %v1022
    %v1045 = vmul.f32 %v1023, %v1023
    %v1046 = vmul.f32 %v1024, %v1024
    %v1047 = vadd.f32 %v1039, %v1040
    %v1048 = vadd.f32 %v1047, %v1041
    %v1049 = vadd.f32 %v1048, %v1042
    %v1050 = vadd.f32 %v1049, %v1043
    %v1051 = vadd.f32 %v1050, %v1044
    %v1052 = vadd.f32 %v1051, %v1045
    %v1053 = vadd.f32 %v1052, %v1046
    %v1054 = vrot.slane %v1053, 4
    %v1055 = vadd.f32 %v1053, %v1054
    %v1056 = vrot.slane %v1055, 2
    %v1057 = vadd.f32 %v1055, %v1056
    %v1058 = vrot.slane %v1057, 1
    %v1059 = vadd.f32 %v1057, %v1058
    %v1060 = vmul.f32 %v1059, 0.023809524
    %v1061 = vmul.f32 %v1038, %v1038
    %v1062 = vsub.f32 %v1060, %v1061
    %v1063 = vmax.f32 %v1062, 0.0
    %v1064 = vld [vmem:[%s4] sm:$0x1]
    %v1065 = vadd.f32 %v1063, 1e-05
    %v1066 = vrsqrt.pop %v1065
    %v1067 = vmul.f32 %v1064, %v1066
    %v1068 = vld [vmem:[%s5] sm:$0x1]
    %v1069 = vmul.f32 %v1038, %v1067
    %v1070 = vsub.f32 %v1068, %v1069
    %v1072 = vlaneseq
    %v1073 = vshrl.u32 %v1072, 7
    %v1074 = vsub.s32 0, %v1073
    %v1075 = vrot.slane %v1067, %v1074
    %v1077 = vmul.f32 %v962, %v1075
    %v1078 = vmul.f32 %v965, %v1075
    %v1079 = vmul.f32 %v970, %v1075
    %v1080 = vmul.f32 %v973, %v1075
    %v1081 = vmul.f32 %v978, %v1075
    %v1082 = vmul.f32 %v981, %v1075
    %v1083 = vmul.f32 %v986, %v1075
    %v1084 = vmul.f32 %v989, %v1075
    %v1086 = vlaneseq
    %v1087 = vshrl.u32 %v1086, 7
    %v1088 = vsub.s32 0, %v1087
    %v1089 = vrot.slane %v1070, %v1088
    %v1091 = vadd.f32 %v1077, %v1089
    %v1092 = vadd.f32 %v1078, %v1089
    %v1093 = vadd.f32 %v1079, %v1089
    %v1094 = vadd.f32 %v1080, %v1089
    %v1095 = vadd.f32 %v1081, %v1089
    %v1096 = vadd.f32 %v1082, %v1089
    %v1097 = vadd.f32 %v1083, %v1089
    %v1098 = vadd.f32 %v1084, %v1089
    %v1099 = vmax.f32 %v1091, 0.0
    %v1100 = vmax.f32 %v1092, 0.0
    %v1101 = vmax.f32 %v1093, 0.0
    %v1102 = vmax.f32 %v1094, 0.0
    %v1103 = vmax.f32 %v1095, 0.0
    %v1104 = vmax.f32 %v1096, 0.0
    %v1105 = vmax.f32 %v1097, 0.0
    %v1106 = vmax.f32 %v1098, 0.0
    %v1107 = vld [vmem:[%s16] sm:$0xff]
    %v1108 = vld [vmem:[%s16 + $0x8] sm:$0xff]
    %v1109 = vld [vmem:[%s16 + $0x10] sm:$0xff]
    %v1110 = vld [vmem:[%s16 + $0x18] sm:$0xff]
    %v1111 = vld [vmem:[%s16 + $0x20] sm:$0xff]
    %v1112 = vld [vmem:[%s16 + $0x28] sm:$0xff]
    %v1113 = vld [vmem:[%s16 + $0x30] sm:$0xff]
    %v1114 = vld [vmem:[%s16 + $0x38] sm:$0xff]
    %vm1115 = vcmask 523264
    %v1117 = vsel %vm1115, %v1107, 0
    %v1120 = vsel %vm1115, %v1108, 0
    %v1123 = vsel %vm1115, %v1109, 0
    %v1126 = vsel %vm1115, %v1110, 0
    %v1129 = vsel %vm1115, %v1111, 0
    %v1132 = vsel %vm1115, %v1112, 0
    %v1135 = vsel %vm1115, %v1113, 0
    %v1138 = vsel %vm1115, %v1114, 0
    %1140 = vmatprep.subr.mxu0 0.0
    %1141 = vmatpush1.msra.mxu0 %v1099
    %1142 = vmatprep.subr.mxu0 0.0
    %1143 = vmatpush1.msra.mxu0 %v1100
    %1144 = vmatprep.subr.mxu0 0.0
    %1145 = vmatpush1.msra.mxu0 %v1101
    %1146 = vmatprep.subr.mxu0 0.0
    %1147 = vmatpush1.msra.mxu0 %v1102
    %1148 = vmatprep.subr.mxu0 0.0
    %1149 = vmatpush1.msra.mxu0 %v1103
    %1150 = vmatprep.subr.mxu0 0.0
    %1151 = vmatpush1.msra.mxu0 %v1104
    %1152 = vmatprep.subr.mxu0 0.0
    %1153 = vmatpush1.msra.mxu0 %v1105
    %1154 = vmatprep.subr.mxu0 0.0
    %1155 = vmatpush1.msra.mxu0 %v1106
    %1156 = vmatprep.subr.mxu0 0.0
    %1157 = vmatpush1.msra.mxu0 0.0
    %1158 = vmatprep.subr.mxu0 0.0
    %1159 = vmatpush1.msra.mxu0 0.0
    %1160 = vmatprep.subr.mxu0 0.0
    %1161 = vmatpush1.msra.mxu0 0.0
    %1162 = vmatprep.subr.mxu0 0.0
    %1163 = vmatpush1.msra.mxu0 0.0
    %1164 = vmatprep.subr.mxu0 0.0
    %1165 = vmatpush1.msra.mxu0 0.0
    %1166 = vmatprep.subr.mxu0 0.0
    %1167 = vmatpush1.msra.mxu0 0.0
    %1168 = vmatprep.subr.mxu0 0.0
    %1169 = vmatpush1.msra.mxu0 0.0
    %1170 = vmatprep.subr.mxu0 0.0
    %1171 = vmatpush1.msra.mxu0 0.0
    %1172 = vmatprep.subr.mxu0 0.0
    %1173 = vmatpush1.msra.mxu0 0.0
    %1174 = vmatprep.subr.mxu0 0.0
    %1175 = vmatpush1.msra.mxu0 0.0
    %1176 = vmatprep.subr.mxu0 0.0
    %1177 = vmatpush1.msra.mxu0 0.0
    %1178 = vmatprep.subr.mxu0 0.0
    %1179 = vmatpush1.msra.mxu0 0.0
    %1180 = vmatprep.subr.mxu0 0.0
    %1181 = vmatpush1.msra.mxu0 0.0
    %1182 = vmatprep.subr.mxu0 0.0
    %1183 = vmatpush1.msra.mxu0 0.0
    %1184 = vmatprep.subr.mxu0 0.0
    %1185 = vmatpush1.msra.mxu0 0.0
    %1186 = vmatprep.subr.mxu0 0.0
    %1187 = vmatpush1.msra.mxu0 0.0
    %1188 = vmatprep.subr.mxu0 0.0
    %1189 = vmatpush1.msra.mxu0 0.0
    %1190 = vmatprep.subr.mxu0 0.0
    %1191 = vmatpush1.msra.mxu0 0.0
    %1192 = vmatprep.subr.mxu0 0.0
    %1193 = vmatpush1.msra.mxu0 0.0
    %1194 = vmatprep.subr.mxu0 0.0
    %1195 = vmatpush1.msra.mxu0 0.0
    %1196 = vmatprep.subr.mxu0 0.0
    %1197 = vmatpush1.msra.mxu0 0.0
    %1198 = vmatprep.subr.mxu0 0.0
    %1199 = vmatpush1.msra.mxu0 0.0
    %1200 = vmatprep.subr.mxu0 0.0
    %1201 = vmatpush1.msra.mxu0 0.0
    %1202 = vmatprep.subr.mxu0 0.0
    %1203 = vmatpush1.msra.mxu0 0.0
    %1204 = vmatprep.mubr.f32.mxu0 0.0
    %1205 = vmatmul.mubr.f32.gmra.mrb[0].mxu0 %v1117
    %v1206 = vpop.f32.mrb[0].mxu0
    %v1207 = vadd.f32 0.0, %v1206
    %v1208 = vpop.f32.mrb[0].mxu0
    %1209 = vmatprep.mubr.f32.mxu0 0.0
    %1210 = vmatmul.mubr.f32.gmra.mrb[0].mxu0 %v1120
    %v1211 = vpop.f32.mrb[0].mxu0
    %v1212 = vadd.f32 0.0, %v1211
    %v1213 = vpop.f32.mrb[0].mxu0
    %1214 = vmatprep.mubr.f32.mxu0 0.0
    %1215 = vmatmul.mubr.f32.gmra.mrb[0].mxu0 %v1123
    %v1216 = vpop.f32.mrb[0].mxu0
    %v1217 = vadd.f32 0.0, %v1216
    %v1218 = vpop.f32.mrb[0].mxu0
    %1219 = vmatprep.mubr.f32.mxu0 0.0
    %1220 = vmatmul.mubr.f32.gmra.mrb[0].mxu0 %v1126
    %v1221 = vpop.f32.mrb[0].mxu0
    %v1222 = vadd.f32 0.0, %v1221
    %v1223 = vpop.f32.mrb[0].mxu0
    %1224 = vmatprep.mubr.f32.mxu0 0.0
    %1225 = vmatmul.mubr.f32.gmra.mrb[0].mxu0 %v1129
    %v1226 = vpop.f32.mrb[0].mxu0
    %v1227 = vadd.f32 0.0, %v1226
    %v1228 = vpop.f32.mrb[0].mxu0
    %1229 = vmatprep.mubr.f32.mxu0 0.0
    %1230 = vmatmul.mubr.f32.gmra.mrb[0].mxu0 %v1132
    %v1231 = vpop.f32.mrb[0].mxu0
    %v1232 = vadd.f32 0.0, %v1231
    %v1233 = vpop.f32.mrb[0].mxu0
    %1234 = vmatprep.mubr.f32.mxu0 0.0
    %1235 = vmatmul.mubr.f32.gmra.mrb[0].mxu0 %v1135
    %v1236 = vpop.f32.mrb[0].mxu0
    %v1237 = vadd.f32 0.0, %v1236
    %v1238 = vpop.f32.mrb[0].mxu0
    %1239 = vmatprep.mubr.f32.mxu0 0.0
    %1240 = vmatmul.mubr.f32.gmra.mrb[0].mxu0 %v1138
    %v1241 = vpop.f32.mrb[0].mxu0
    %v1242 = vadd.f32 0.0, %v1241
    %v1243 = vpop.f32.mrb[0].mxu0
    %1244 = vdwg.mxu0
    %v1245 = vmax.f32 %v1207, %v1227
    %v1246 = vmax.f32 %v1212, %v1232
    %v1247 = vmax.f32 %v1217, %v1237
    %v1248 = vmax.f32 %v1222, %v1242
    %v1253 = vrot.slane %v1245, 1
    %v1254 = vrot.slane %v1246, 1
    %v1255 = vsel %vm354, %v1253, %v1254
    %v1256 = vrot.slane %v1247, 1
    %v1257 = vsel %vm354, %v1254, %v1256
    %v1258 = vrot.slane %v1248, 1
    %v1259 = vsel %vm354, %v1256, %v1258
    %v1260 = vsel %vm354, %v1258, %v370
    %v1265 = vrot.slane %v1245, 2
    %v1266 = vrot.slane %v1246, 2
    %v1267 = vsel %vm380, %v1265, %v1266
    %v1268 = vrot.slane %v1247, 2
    %v1269 = vsel %vm380, %v1266, %v1268
    %v1270 = vrot.slane %v1248, 2
    %v1271 = vsel %vm380, %v1268, %v1270
    %v1272 = vsel %vm380, %v1270, %v396
    %v1277 = vrot.slane %v1245, 3
    %v1278 = vrot.slane %v1246, 3
    %v1279 = vsel %vm406, %v1277, %v1278
    %v1280 = vrot.slane %v1247, 3
    %v1281 = vsel %vm406, %v1278, %v1280
    %v1282 = vrot.slane %v1248, 3
    %v1283 = vsel %vm406, %v1280, %v1282
    %v1284 = vsel %vm406, %v1282, %v422
    %v1289 = vrot.slane %v1245, 4
    %v1290 = vrot.slane %v1246, 4
    %v1291 = vsel %vm141, %v1289, %v1290
    %v1292 = vrot.slane %v1247, 4
    %v1293 = vsel %vm141, %v1290, %v1292
    %v1294 = vrot.slane %v1248, 4
    %v1295 = vsel %vm141, %v1292, %v1294
    %v1296 = vsel %vm141, %v1294, %v447
    %v1301 = vpack.c.bf16 %v1246, %v1245
    %v1302 = vpack.c.bf16 %v1257, %v1255
    %v1303 = vpack.c.bf16 %v1269, %v1267
    %v1304 = vpack.c.bf16 %v1281, %v1279
    %v1305 = vpack.c.bf16 %v1293, %v1291
    %v1306 = vpack.c.bf16 %v1248, %v1247
    %v1307 = vpack.c.bf16 %v1260, %v1259
    %v1308 = vpack.c.bf16 %v1272, %v1271
    %v1309 = vpack.c.bf16 %v1284, %v1283
    %v1310 = vpack.c.bf16 %v1296, %v1295
    %v1311 = vld [vmem:[#allocation2] sm:$0xf]
    %v1312 = vld [vmem:[#allocation2 + $0x4] sm:$0xf]
    %v1313 = vld [vmem:[#allocation2 + $0x8] sm:$0xf]
    %v1314 = vld [vmem:[#allocation2 + $0xc] sm:$0xf]
    %v1315 = vld [vmem:[#allocation2 + $0x10] sm:$0xf]
    %v1316 = vld [vmem:[#allocation2 + $0x14] sm:$0xf]
    %v1317 = vld [vmem:[#allocation2 + $0x18] sm:$0xf]
    %v1318 = vld [vmem:[#allocation2 + $0x1c] sm:$0xf]
    %v1319 = vld [vmem:[#allocation2 + $0x20] sm:$0xf]
    %v1320 = vld [vmem:[#allocation2 + $0x24] sm:$0xf]
    %v1321 = vld [vmem:[#allocation2 + $0x28] sm:$0xf]
    %v1322 = vld [vmem:[#allocation2 + $0x2c] sm:$0xf]
    %v1323 = vld [vmem:[#allocation2 + $0x30] sm:$0xf]
    %v1324 = vld [vmem:[#allocation2 + $0x34] sm:$0xf]
    %v1325 = vld [vmem:[#allocation2 + $0x38] sm:$0xf]
    %v1326 = vld [vmem:[#allocation2 + $0x3c] sm:$0xf]
    %v1327 = vld [vmem:[#allocation2 + $0x40] sm:$0xf]
    %v1328 = vld [vmem:[#allocation2 + $0x44] sm:$0xf]
    %v1329 = vld [vmem:[#allocation2 + $0x48] sm:$0xf]
    %v1330 = vld [vmem:[#allocation2 + $0x4c] sm:$0xf]
    %v1331 = vld [vmem:[#allocation2 + $0x50] sm:$0xf]
    %v1332 = vld [vmem:[#allocation2 + $0x54] sm:$0xf]
    %v1333 = vld [vmem:[#allocation2 + $0x58] sm:$0xf]
    %v1334 = vld [vmem:[#allocation2 + $0x5c] sm:$0xf]
    %v1335 = vld [vmem:[#allocation2 + $0x60] sm:$0xf]
    %v1336 = vld [vmem:[#allocation2 + $0x64] sm:$0xf]
    %v1337 = vld [vmem:[#allocation2 + $0x68] sm:$0xf]
    %v1338 = vld [vmem:[#allocation2 + $0x6c] sm:$0xf]
    %v1339 = vld [vmem:[#allocation2 + $0x70] sm:$0xf]
    %v1340 = vld [vmem:[#allocation2 + $0x74] sm:$0xf]
    %v1341 = vld [vmem:[#allocation2 + $0x78] sm:$0xf]
    %v1342 = vld [vmem:[#allocation2 + $0x7c] sm:$0xf]
    %v1343 = vld [vmem:[#allocation2 + $0x80] sm:$0xf]
    %v1344 = vld [vmem:[#allocation2 + $0x84] sm:$0xf]
    %v1345 = vld [vmem:[#allocation2 + $0x88] sm:$0xf]
    %v1346 = vld [vmem:[#allocation2 + $0x8c] sm:$0xf]
    %v1347 = vld [vmem:[#allocation2 + $0x90] sm:$0xf]
    %v1348 = vld [vmem:[#allocation2 + $0x94] sm:$0xf]
    %v1349 = vld [vmem:[#allocation2 + $0x98] sm:$0xf]
    %v1350 = vld [vmem:[#allocation2 + $0x9c] sm:$0xf]
    %v1351 = vld [vmem:[#allocation2 + $0xa0] sm:$0xf]
    %v1352 = vld [vmem:[#allocation2 + $0xa4] sm:$0xf]
    %v1353 = vld [vmem:[#allocation2 + $0xa8] sm:$0xf]
    %v1354 = vld [vmem:[#allocation2 + $0xac] sm:$0xf]
    %v1355 = vld [vmem:[#allocation2 + $0xb0] sm:$0xf]
    %v1356 = vld [vmem:[#allocation2 + $0xb4] sm:$0xf]
    %v1357 = vld [vmem:[#allocation2 + $0xb8] sm:$0xf]
    %v1358 = vld [vmem:[#allocation2 + $0xbc] sm:$0xf]
    %v1359 = vld [vmem:[#allocation2 + $0xc0] sm:$0xf]
    %v1360 = vld [vmem:[#allocation2 + $0xc4] sm:$0xf]
    %v1361 = vld [vmem:[#allocation2 + $0xc8] sm:$0xf]
    %v1362 = vld [vmem:[#allocation2 + $0xcc] sm:$0xf]
    %v1363 = vld [vmem:[#allocation2 + $0xd0] sm:$0xf]
    %v1364 = vld [vmem:[#allocation2 + $0xd4] sm:$0xf]
    %v1365 = vld [vmem:[#allocation2 + $0xd8] sm:$0xf]
    %v1366 = vld [vmem:[#allocation2 + $0xdc] sm:$0xf]
    %v1367 = vld [vmem:[#allocation2 + $0xe0] sm:$0xf]
    %v1368 = vld [vmem:[#allocation2 + $0xe4] sm:$0xf]
    %v1369 = vld [vmem:[#allocation2 + $0xe8] sm:$0xf]
    %v1370 = vld [vmem:[#allocation2 + $0xec] sm:$0xf]
    %v1371 = vld [vmem:[#allocation2 + $0xf0] sm:$0xf]
    %v1372 = vld [vmem:[#allocation2 + $0xf4] sm:$0xf]
    %v1373 = vld [vmem:[#allocation2 + $0xf8] sm:$0xf]
    %v1374 = vld [vmem:[#allocation2 + $0xfc] sm:$0xf]
    %v1375 = vld [vmem:[#allocation2 + $0x100] sm:$0xf]
    %v1376 = vld [vmem:[#allocation2 + $0x104] sm:$0xf]
    %v1377 = vld [vmem:[#allocation2 + $0x108] sm:$0xf]
    %v1378 = vld [vmem:[#allocation2 + $0x10c] sm:$0xf]
    %v1379 = vld [vmem:[#allocation2 + $0x110] sm:$0xf]
    %v1380 = vld [vmem:[#allocation2 + $0x114] sm:$0xf]
    %v1381 = vld [vmem:[#allocation2 + $0x118] sm:$0xf]
    %v1382 = vld [vmem:[#allocation2 + $0x11c] sm:$0xf]
    %v1383 = vld [vmem:[#allocation2 + $0x120] sm:$0xf]
    %v1384 = vld [vmem:[#allocation2 + $0x124] sm:$0xf]
    %v1385 = vld [vmem:[#allocation2 + $0x128] sm:$0xf]
    %v1386 = vld [vmem:[#allocation2 + $0x12c] sm:$0xf]
    %v1387 = vld [vmem:[#allocation2 + $0x130] sm:$0xf]
    %v1388 = vld [vmem:[#allocation2 + $0x134] sm:$0xf]
    %v1389 = vld [vmem:[#allocation2 + $0x138] sm:$0xf]
    %v1390 = vld [vmem:[#allocation2 + $0x13c] sm:$0xf]
    %v1471 = vunpack.c.l.b16 %v1311
    %v1472 = vunpack.c.l.b16 %v1312
    %v1473 = vunpack.c.l.b16 %v1313
    %v1474 = vunpack.c.l.b16 %v1314
    %v1475 = vunpack.c.l.b16 %v1315
    %v1476 = vunpack.c.l.b16 %v1316
    %v1477 = vunpack.c.l.b16 %v1317
    %v1478 = vunpack.c.l.b16 %v1318
    %v1479 = vunpack.c.l.b16 %v1319
    %v1480 = vunpack.c.l.b16 %v1320
    %v1481 = vunpack.c.l.b16 %v1321
    %v1482 = vunpack.c.l.b16 %v1322
    %v1483 = vunpack.c.l.b16 %v1323
    %v1484 = vunpack.c.l.b16 %v1324
    %v1485 = vunpack.c.l.b16 %v1325
    %v1486 = vunpack.c.l.b16 %v1326
    %v1487 = vunpack.c.l.b16 %v1327
    %v1488 = vunpack.c.l.b16 %v1328
    %v1489 = vunpack.c.l.b16 %v1329
    %v1490 = vunpack.c.l.b16 %v1330
    %v1491 = vunpack.c.l.b16 %v1331
    %v1492 = vunpack.c.l.b16 %v1332
    %v1493 = vunpack.c.l.b16 %v1333
    %v1494 = vunpack.c.l.b16 %v1334
    %v1495 = vunpack.c.l.b16 %v1335
    %v1496 = vunpack.c.l.b16 %v1336
    %v1497 = vunpack.c.l.b16 %v1337
    %v1498 = vunpack.c.l.b16 %v1338
    %v1499 = vunpack.c.l.b16 %v1339
    %v1500 = vunpack.c.l.b16 %v1340
    %v1501 = vunpack.c.l.b16 %v1341
    %v1502 = vunpack.c.l.b16 %v1342
    %v1503 = vunpack.c.l.b16 %v1343
    %v1504 = vunpack.c.l.b16 %v1344
    %v1505 = vunpack.c.l.b16 %v1345
    %v1506 = vunpack.c.l.b16 %v1346
    %v1507 = vunpack.c.l.b16 %v1347
    %v1508 = vunpack.c.l.b16 %v1348
    %v1509 = vunpack.c.l.b16 %v1349
    %v1510 = vunpack.c.l.b16 %v1350
    %v1511 = vunpack.c.l.b16 %v1351
    %v1512 = vunpack.c.l.b16 %v1352
    %v1513 = vunpack.c.l.b16 %v1353
    %v1514 = vunpack.c.l.b16 %v1354
    %v1515 = vunpack.c.l.b16 %v1355
    %v1516 = vunpack.c.l.b16 %v1356
    %v1517 = vunpack.c.l.b16 %v1357
    %v1518 = vunpack.c.l.b16 %v1358
    %v1519 = vunpack.c.l.b16 %v1359
    %v1520 = vunpack.c.l.b16 %v1360
    %v1521 = vunpack.c.l.b16 %v1361
    %v1522 = vunpack.c.l.b16 %v1362
    %v1523 = vunpack.c.l.b16 %v1363
    %v1524 = vunpack.c.l.b16 %v1364
    %v1525 = vunpack.c.l.b16 %v1365
    %v1526 = vunpack.c.l.b16 %v1366
    %v1527 = vunpack.c.l.b16 %v1367
    %v1528 = vunpack.c.l.b16 %v1368
    %v1529 = vunpack.c.l.b16 %v1369
    %v1530 = vunpack.c.l.b16 %v1370
    %v1531 = vunpack.c.l.b16 %v1371
    %v1532 = vunpack.c.l.b16 %v1372
    %v1533 = vunpack.c.l.b16 %v1373
    %v1534 = vunpack.c.l.b16 %v1374
    %v1535 = vunpack.c.l.b16 %v1375
    %v1536 = vunpack.c.l.b16 %v1376
    %v1537 = vunpack.c.l.b16 %v1377
    %v1538 = vunpack.c.l.b16 %v1378
    %v1539 = vunpack.c.l.b16 %v1379
    %v1540 = vunpack.c.l.b16 %v1380
    %v1541 = vunpack.c.l.b16 %v1381
    %v1542 = vunpack.c.l.b16 %v1382
    %v1543 = vunpack.c.l.b16 %v1383
    %v1544 = vunpack.c.l.b16 %v1384
    %v1545 = vunpack.c.l.b16 %v1385
    %v1546 = vunpack.c.l.b16 %v1386
    %v1547 = vunpack.c.l.b16 %v1387
    %v1548 = vunpack.c.l.b16 %v1388
    %v1549 = vunpack.c.l.b16 %v1389
    %v1550 = vunpack.c.l.b16 %v1390
    %v1551 = vpack.c.b16 %v1472, %v1471
    %v1552 = vpack.c.b16 %v1474, %v1473
    %v1553 = vpack.c.b16 %v1476, %v1475
    %v1554 = vpack.c.b16 %v1478, %v1477
    %v1555 = vpack.c.b16 %v1480, %v1479
    %v1556 = vpack.c.b16 %v1482, %v1481
    %v1557 = vpack.c.b16 %v1484, %v1483
    %v1558 = vpack.c.b16 %v1486, %v1485
    %v1559 = vpack.c.b16 %v1488, %v1487
    %v1560 = vpack.c.b16 %v1490, %v1489
    %v1561 = vpack.c.b16 %v1492, %v1491
    %v1562 = vpack.c.b16 %v1494, %v1493
    %v1563 = vpack.c.b16 %v1496, %v1495
    %v1564 = vpack.c.b16 %v1498, %v1497
    %v1565 = vpack.c.b16 %v1500, %v1499
    %v1566 = vpack.c.b16 %v1502, %v1501
    %v1567 = vpack.c.b16 %v1504, %v1503
    %v1568 = vpack.c.b16 %v1506, %v1505
    %v1569 = vpack.c.b16 %v1508, %v1507
    %v1570 = vpack.c.b16 %v1510, %v1509
    %v1571 = vpack.c.b16 %v1512, %v1511
    %v1572 = vpack.c.b16 %v1514, %v1513
    %v1573 = vpack.c.b16 %v1516, %v1515
    %v1574 = vpack.c.b16 %v1518, %v1517
    %v1575 = vpack.c.b16 %v1520, %v1519
    %v1576 = vpack.c.b16 %v1522, %v1521
    %v1577 = vpack.c.b16 %v1524, %v1523
    %v1578 = vpack.c.b16 %v1526, %v1525
    %v1579 = vpack.c.b16 %v1528, %v1527
    %v1580 = vpack.c.b16 %v1530, %v1529
    %v1581 = vpack.c.b16 %v1532, %v1531
    %v1582 = vpack.c.b16 %v1534, %v1533
    %v1583 = vpack.c.b16 %v1536, %v1535
    %v1584 = vpack.c.b16 %v1538, %v1537
    %v1585 = vpack.c.b16 %v1540, %v1539
    %v1586 = vpack.c.b16 %v1542, %v1541
    %v1587 = vpack.c.b16 %v1544, %v1543
    %v1588 = vpack.c.b16 %v1546, %v1545
    %v1589 = vpack.c.b16 %v1548, %v1547
    %v1590 = vpack.c.b16 %v1550, %v1549
    %1631 = vmatprep.subr.bf16.mxu0 0
    %1632 = vmatpush1.bf16.msra.mxu0 %v1551
    %1633 = vmatprep.subr.bf16.mxu0 0
    %1634 = vmatpush1.bf16.msra.mxu0 %v1552
    %1635 = vmatprep.subr.bf16.mxu0 0
    %1636 = vmatpush1.bf16.msra.mxu0 %v1553
    %1637 = vmatprep.subr.bf16.mxu0 0
    %1638 = vmatpush1.bf16.msra.mxu0 %v1554
    %1639 = vmatprep.subr.bf16.mxu0 0
    %1640 = vmatpush1.bf16.msra.mxu0 %v1555
    %1641 = vmatprep.subr.bf16.mxu0 0
    %1642 = vmatpush1.bf16.msra.mxu0 %v1556
    %1643 = vmatprep.subr.bf16.mxu0 0
    %1644 = vmatpush1.bf16.msra.mxu0 %v1557
    %1645 = vmatprep.subr.bf16.mxu0 0
    %1646 = vmatpush1.bf16.msra.mxu0 %v1558
    %1647 = vmatprep.subr.bf16.mxu0 0
    %1648 = vmatpush1.bf16.msra.mxu0 %v1559
    %1649 = vmatprep.subr.bf16.mxu0 0
    %1650 = vmatpush1.bf16.msra.mxu0 %v1560
    %1651 = vmatprep.subr.bf16.mxu0 0
    %1652 = vmatpush1.bf16.msra.mxu0 %v1561
    %1653 = vmatprep.subr.bf16.mxu0 0
    %1654 = vmatpush1.bf16.msra.mxu0 %v1562
    %1655 = vmatprep.subr.bf16.mxu0 0
    %1656 = vmatpush1.bf16.msra.mxu0 %v1563
    %1657 = vmatprep.subr.bf16.mxu0 0
    %1658 = vmatpush1.bf16.msra.mxu0 %v1564
    %1659 = vmatprep.subr.bf16.mxu0 0
    %1660 = vmatpush1.bf16.msra.mxu0 %v1565
    %1661 = vmatprep.subr.bf16.mxu0 0
    %1662 = vmatpush1.bf16.msra.mxu0 %v1566
    %1663 = vmatprep.mubr.bf16.mxu0 %v1302
    %1664 = vmatmul.mubr.bf16.gmra.mrb[0].mxu0 %v1301
    %v1665 = vpop.f32.mrb[0].mxu0
    %v1666 = vadd.f32 0.0, %v1665
    %v1667 = vpop.f32.mrb[0].mxu0
    %v1668 = vpop.f32.mrb[0].mxu0
    %v1669 = vadd.f32 0.0, %v1668
    %v1670 = vpop.f32.mrb[0].mxu0
    %1671 = vmatprep.mubr.bf16.mxu0 %v1307
    %1672 = vmatmul.mubr.bf16.gmra.mrb[0].mxu0 %v1306
    %v1673 = vpop.f32.mrb[0].mxu0
    %v1674 = vadd.f32 0.0, %v1673
    %v1675 = vpop.f32.mrb[0].mxu0
    %v1676 = vpop.f32.mrb[0].mxu0
    %v1677 = vadd.f32 0.0, %v1676
    %v1678 = vpop.f32.mrb[0].mxu0
    %1679 = vdwg.mxu0
    %1680 = vmatprep.subr.bf16.mxu0 0
    %1681 = vmatpush1.bf16.msra.mxu0 %v1567
    %1682 = vmatprep.subr.bf16.mxu0 0
    %1683 = vmatpush1.bf16.msra.mxu0 %v1568
    %1684 = vmatprep.subr.bf16.mxu0 0
    %1685 = vmatpush1.bf16.msra.mxu0 %v1569
    %1686 = vmatprep.subr.bf16.mxu0 0
    %1687 = vmatpush1.bf16.msra.mxu0 %v1570
    %1688 = vmatprep.subr.bf16.mxu0 0
    %1689 = vmatpush1.bf16.msra.mxu0 %v1571
    %1690 = vmatprep.subr.bf16.mxu0 0
    %1691 = vmatpush1.bf16.msra.mxu0 %v1572
    %1692 = vmatprep.subr.bf16.mxu0 0
    %1693 = vmatpush1.bf16.msra.mxu0 %v1573
    %1694 = vmatprep.subr.bf16.mxu0 0
    %1695 = vmatpush1.bf16.msra.mxu0 %v1574
    %1696 = vmatprep.subr.bf16.mxu0 0
    %1697 = vmatpush1.bf16.msra.mxu0 %v1575
    %1698 = vmatprep.subr.bf16.mxu0 0
    %1699 = vmatpush1.bf16.msra.mxu0 %v1576
    %1700 = vmatprep.subr.bf16.mxu0 0
    %1701 = vmatpush1.bf16.msra.mxu0 %v1577
    %1702 = vmatprep.subr.bf16.mxu0 0
    %1703 = vmatpush1.bf16.msra.mxu0 %v1578
    %1704 = vmatprep.subr.bf16.mxu0 0
    %1705 = vmatpush1.bf16.msra.mxu0 %v1579
    %1706 = vmatprep.subr.bf16.mxu0 0
    %1707 = vmatpush1.bf16.msra.mxu0 %v1580
    %1708 = vmatprep.subr.bf16.mxu0 0
    %1709 = vmatpush1.bf16.msra.mxu0 %v1581
    %1710 = vmatprep.subr.bf16.mxu0 0
    %1711 = vmatpush1.bf16.msra.mxu0 %v1582
    %1712 = vmatprep.mubr.bf16.mxu0 %v1304
    %1713 = vmatmul.mubr.bf16.gmra.mrb[0].mxu0 %v1303
    %v1714 = vpop.f32.mrb[0].mxu0
    %v1715 = vadd.f32 %v1666, %v1714
    %v1716 = vpop.f32.mrb[0].mxu0
    %v1717 = vpop.f32.mrb[0].mxu0
    %v1718 = vadd.f32 %v1669, %v1717
    %v1719 = vpop.f32.mrb[0].mxu0
    %1720 = vmatprep.mubr.bf16.mxu0 %v1309
    %1721 = vmatmul.mubr.bf16.gmra.mrb[0].mxu0 %v1308
    %v1722 = vpop.f32.mrb[0].mxu0
    %v1723 = vadd.f32 %v1674, %v1722
    %v1724 = vpop.f32.mrb[0].mxu0
    %v1725 = vpop.f32.mrb[0].mxu0
    %v1726 = vadd.f32 %v1677, %v1725
    %v1727 = vpop.f32.mrb[0].mxu0
    %1728 = vdwg.mxu0
    %1729 = vmatprep.subr.bf16.mxu0 0
    %1730 = vmatpush1.bf16.msra.mxu0 %v1583
    %1731 = vmatprep.subr.bf16.mxu0 0
    %1732 = vmatpush1.bf16.msra.mxu0 %v1584
    %1733 = vmatprep.subr.bf16.mxu0 0
    %1734 = vmatpush1.bf16.msra.mxu0 %v1585
    %1735 = vmatprep.subr.bf16.mxu0 0
    %1736 = vmatpush1.bf16.msra.mxu0 %v1586
    %1737 = vmatprep.subr.bf16.mxu0 0
    %1738 = vmatpush1.bf16.msra.mxu0 %v1587
    %1739 = vmatprep.subr.bf16.mxu0 0
    %1740 = vmatpush1.bf16.msra.mxu0 %v1588
    %1741 = vmatprep.subr.bf16.mxu0 0
    %1742 = vmatpush1.bf16.msra.mxu0 %v1589
    %1743 = vmatprep.subr.bf16.mxu0 0
    %1744 = vmatpush1.bf16.msra.mxu0 %v1590
    %1745 = vmatprep.subr.bf16.mxu0 0
    %1746 = vmatpush1.bf16.msra.mxu0 0
    %1747 = vmatprep.subr.bf16.mxu0 0
    %1748 = vmatpush1.bf16.msra.mxu0 0
    %1749 = vmatprep.subr.bf16.mxu0 0
    %1750 = vmatpush1.bf16.msra.mxu0 0
    %1751 = vmatprep.subr.bf16.mxu0 0
    %1752 = vmatpush1.bf16.msra.mxu0 0
    %1753 = vmatprep.subr.bf16.mxu0 0
    %1754 = vmatpush1.bf16.msra.mxu0 0
    %1755 = vmatprep.subr.bf16.mxu0 0
    %1756 = vmatpush1.bf16.msra.mxu0 0
    %1757 = vmatprep.subr.bf16.mxu0 0
    %1758 = vmatpush1.bf16.msra.mxu0 0
    %1759 = vmatprep.subr.bf16.mxu0 0
    %1760 = vmatpush1.bf16.msra.mxu0 0
    %1761 = vmatprep.mubr.bf16.mxu0 0
    %1762 = vmatmul.mubr.bf16.gmra.mrb[0].mxu0 %v1305
    %v1763 = vpop.f32.mrb[0].mxu0
    %v1764 = vadd.f32 %v1715, %v1763
    %v1765 = vpop.f32.mrb[0].mxu0
    %v1766 = vpop.f32.mrb[0].mxu0
    %v1767 = vadd.f32 %v1718, %v1766
    %v1768 = vpop.f32.mrb[0].mxu0
    %1769 = vmatprep.mubr.bf16.mxu0 0
    %1770 = vmatmul.mubr.bf16.gmra.mrb[0].mxu0 %v1310
    %v1771 = vpop.f32.mrb[0].mxu0
    %v1772 = vadd.f32 %v1723, %v1771
    %v1773 = vpop.f32.mrb[0].mxu0
    %v1774 = vpop.f32.mrb[0].mxu0
    %v1775 = vadd.f32 %v1726, %v1774
    %v1776 = vpop.f32.mrb[0].mxu0
    %1777 = vdwg.mxu0
    %v1778 = vand.u32 %v993, 15
    %v1779 = vand.u32 %v994, 15
    %v1780 = vand.u32 %v995, 15
    %v1781 = vand.u32 %v996, 15
    %vm1782 = vcmp.lt.s32.totalorder %v1778, 6
    %vm1783 = vcmp.lt.s32.totalorder %v1779, 6
    %vm1784 = vcmp.lt.s32.totalorder %v1780, 6
    %vm1785 = vcmp.lt.s32.totalorder %v1781, 6
    %v1786 = vsel %vm1782, %v1764, 0.0
    %v1787 = vsel %vm1783, %v1767, 0.0
    %v1788 = vsel %vm1784, %v1772, 0.0
    %v1789 = vsel %vm1785, %v1775, 0.0
    %v1790 = vadd.f32 %v1786, %v1787
    %v1791 = vadd.f32 %v1790, %v1788
    %v1792 = vadd.f32 %v1791, %v1789
    %v1793 = vrot.slane %v1792, 4
    %v1794 = vadd.f32 %v1792, %v1793
    %v1795 = vrot.slane %v1794, 2
    %v1796 = vadd.f32 %v1794, %v1795
    %v1797 = vrot.slane %v1796, 1
    %v1798 = vadd.f32 %v1796, %v1797
    %v1799 = vmul.f32 %v1798, 0.083333336
    %v1800 = vmul.f32 %v1786, %v1786
    %v1801 = vmul.f32 %v1787, %v1787
    %v1802 = vmul.f32 %v1788, %v1788
    %v1803 = vmul.f32 %v1789, %v1789
    %v1804 = vadd.f32 %v1800, %v1801
    %v1805 = vadd.f32 %v1804, %v1802
    %v1806 = vadd.f32 %v1805, %v1803
    %v1807 = vrot.slane %v1806, 4
    %v1808 = vadd.f32 %v1806, %v1807
    %v1809 = vrot.slane %v1808, 2
    %v1810 = vadd.f32 %v1808, %v1809
    %v1811 = vrot.slane %v1810, 1
    %v1812 = vadd.f32 %v1810, %v1811
    %v1813 = vmul.f32 %v1812, 0.083333336
    %v1814 = vmul.f32 %v1799, %v1799
    %v1815 = vsub.f32 %v1813, %v1814
    %v1816 = vmax.f32 %v1815, 0.0
    %v1817 = vld [vmem:[%s7] sm:$0x1]
    %v1818 = vadd.f32 %v1816, 1e-05
    %v1819 = vrsqrt.pop %v1818
    %v1820 = vmul.f32 %v1817, %v1819
    %v1821 = vld [vmem:[%s8] sm:$0x1]
    %v1822 = vmul.f32 %v1799, %v1820
    %v1823 = vsub.f32 %v1821, %v1822
    %v1825 = vlaneseq
    %v1826 = vshrl.u32 %v1825, 7
    %v1827 = vsub.s32 0, %v1826
    %v1828 = vrot.slane %v1820, %v1827
    %v1830 = vmul.f32 %v1764, %v1828
    %v1831 = vmul.f32 %v1767, %v1828
    %v1832 = vmul.f32 %v1772, %v1828
    %v1833 = vmul.f32 %v1775, %v1828
    %v1835 = vlaneseq
    %v1836 = vshrl.u32 %v1835, 7
    %v1837 = vsub.s32 0, %v1836
    %v1838 = vrot.slane %v1823, %v1837
    %v1840 = vadd.f32 %v1830, %v1838
    %v1841 = vadd.f32 %v1831, %v1838
    %v1842 = vadd.f32 %v1832, %v1838
    %v1843 = vadd.f32 %v1833, %v1838
    %v1844 = vmax.f32 %v1840, 0.0
    %v1845 = vmax.f32 %v1841, 0.0
    %v1846 = vmax.f32 %v1842, 0.0
    %v1847 = vmax.f32 %v1843, 0.0
    %v1848 = vld [vmem:[%s17] sm:$0xff]
    %v1849 = vld [vmem:[%s17 + $0x8] sm:$0xff]
    %v1850 = vld [vmem:[%s17 + $0x10] sm:$0xff]
    %v1851 = vld [vmem:[%s17 + $0x18] sm:$0xff]
    %vm1852 = vcmask 261120
    %v1854 = vsel %vm1852, %v1848, 0
    %v1857 = vsel %vm1852, %v1849, 0
    %v1860 = vsel %vm1852, %v1850, 0
    %v1863 = vsel %vm1852, %v1851, 0
    %1865 = vmatprep.subr.mxu0 0.0
    %1866 = vmatpush1.msra.mxu0 %v1844
    %1867 = vmatprep.subr.mxu0 0.0
    %1868 = vmatpush1.msra.mxu0 %v1845
    %1869 = vmatprep.subr.mxu0 0.0
    %1870 = vmatpush1.msra.mxu0 %v1846
    %1871 = vmatprep.subr.mxu0 0.0
    %1872 = vmatpush1.msra.mxu0 %v1847
    %1873 = vmatprep.subr.mxu0 0.0
    %1874 = vmatpush1.msra.mxu0 0.0
    %1875 = vmatprep.subr.mxu0 0.0
    %1876 = vmatpush1.msra.mxu0 0.0
    %1877 = vmatprep.subr.mxu0 0.0
    %1878 = vmatpush1.msra.mxu0 0.0
    %1879 = vmatprep.subr.mxu0 0.0
    %1880 = vmatpush1.msra.mxu0 0.0
    %1881 = vmatprep.subr.mxu0 0.0
    %1882 = vmatpush1.msra.mxu0 0.0
    %1883 = vmatprep.subr.mxu0 0.0
    %1884 = vmatpush1.msra.mxu0 0.0
    %1885 = vmatprep.subr.mxu0 0.0
    %1886 = vmatpush1.msra.mxu0 0.0
    %1887 = vmatprep.subr.mxu0 0.0
    %1888 = vmatpush1.msra.mxu0 0.0
    %1889 = vmatprep.subr.mxu0 0.0
    %1890 = vmatpush1.msra.mxu0 0.0
    %1891 = vmatprep.subr.mxu0 0.0
    %1892 = vmatpush1.msra.mxu0 0.0
    %1893 = vmatprep.subr.mxu0 0.0
    %1894 = vmatpush1.msra.mxu0 0.0
    %1895 = vmatprep.subr.mxu0 0.0
    %1896 = vmatpush1.msra.mxu0 0.0
    %1897 = vmatprep.subr.mxu0 0.0
    %1898 = vmatpush1.msra.mxu0 0.0
    %1899 = vmatprep.subr.mxu0 0.0
    %1900 = vmatpush1.msra.mxu0 0.0
    %1901 = vmatprep.subr.mxu0 0.0
    %1902 = vmatpush1.msra.mxu0 0.0
    %1903 = vmatprep.subr.mxu0 0.0
    %1904 = vmatpush1.msra.mxu0 0.0
    %1905 = vmatprep.subr.mxu0 0.0
    %1906 = vmatpush1.msra.mxu0 0.0
    %1907 = vmatprep.subr.mxu0 0.0
    %1908 = vmatpush1.msra.mxu0 0.0
    %1909 = vmatprep.subr.mxu0 0.0
    %1910 = vmatpush1.msra.mxu0 0.0
    %1911 = vmatprep.subr.mxu0 0.0
    %1912 = vmatpush1.msra.mxu0 0.0
    %1913 = vmatprep.subr.mxu0 0.0
    %1914 = vmatpush1.msra.mxu0 0.0
    %1915 = vmatprep.subr.mxu0 0.0
    %1916 = vmatpush1.msra.mxu0 0.0
    %1917 = vmatprep.subr.mxu0 0.0
    %1918 = vmatpush1.msra.mxu0 0.0
    %1919 = vmatprep.subr.mxu0 0.0
    %1920 = vmatpush1.msra.mxu0 0.0
    %1921 = vmatprep.subr.mxu0 0.0
    %1922 = vmatpush1.msra.mxu0 0.0
    %1923 = vmatprep.subr.mxu0 0.0
    %1924 = vmatpush1.msra.mxu0 0.0
    %1925 = vmatprep.subr.mxu0 0.0
    %1926 = vmatpush1.msra.mxu0 0.0
    %1927 = vmatprep.subr.mxu0 0.0
    %1928 = vmatpush1.msra.mxu0 0.0
    %1929 = vmatprep.mubr.f32.mxu0 0.0
    %1930 = vmatmul.mubr.f32.gmra.mrb[0].mxu0 %v1854
    %v1931 = vpop.f32.mrb[0].mxu0
    %v1932 = vadd.f32 0.0, %v1931
    %v1933 = vpop.f32.mrb[0].mxu0
    %1934 = vmatprep.mubr.f32.mxu0 0.0
    %1935 = vmatmul.mubr.f32.gmra.mrb[0].mxu0 %v1857
    %v1936 = vpop.f32.mrb[0].mxu0
    %v1937 = vadd.f32 0.0, %v1936
    %v1938 = vpop.f32.mrb[0].mxu0
    %1939 = vmatprep.mubr.f32.mxu0 0.0
    %1940 = vmatmul.mubr.f32.gmra.mrb[0].mxu0 %v1860
    %v1941 = vpop.f32.mrb[0].mxu0
    %v1942 = vadd.f32 0.0, %v1941
    %v1943 = vpop.f32.mrb[0].mxu0
    %1944 = vmatprep.mubr.f32.mxu0 0.0
    %1945 = vmatmul.mubr.f32.gmra.mrb[0].mxu0 %v1863
    %v1946 = vpop.f32.mrb[0].mxu0
    %v1947 = vadd.f32 0.0, %v1946
    %v1948 = vpop.f32.mrb[0].mxu0
    %1949 = vdwg.mxu0
    %v1950 = vmax.f32 %v1932, %v1942
    %v1951 = vmax.f32 %v1937, %v1947
    %v1954 = vrot.slane %v1950, 1
    %v1955 = vrot.slane %v1951, 1
    %v1956 = vsel %vm354, %v1954, %v1955
    %v1957 = vsel %vm354, %v1955, %v370
    %v1960 = vrot.slane %v1950, 2
    %v1961 = vrot.slane %v1951, 2
    %v1962 = vsel %vm380, %v1960, %v1961
    %v1963 = vsel %vm380, %v1961, %v396
    %v1966 = vpack.c.bf16 %v1951, %v1950
    %v1967 = vpack.c.bf16 %v1957, %v1956
    %v1968 = vpack.c.bf16 %v1963, %v1962
    %v1969 = vld [vmem:[%s9] sm:$0xf]
    %v1970 = vld [vmem:[%s9 + $0x4] sm:$0xf]
    %v1971 = vld [vmem:[%s9 + $0x8] sm:$0xf]
    %v1972 = vld [vmem:[%s9 + $0xc] sm:$0xf]
    %v1973 = vld [vmem:[%s9 + $0x10] sm:$0xf]
    %v1974 = vld [vmem:[%s9 + $0x14] sm:$0xf]
    %v1975 = vld [vmem:[%s9 + $0x18] sm:$0xf]
    %v1976 = vld [vmem:[%s9 + $0x1c] sm:$0xf]
    %v1977 = vld [vmem:[%s9 + $0x20] sm:$0xf]
    %v1978 = vld [vmem:[%s9 + $0x24] sm:$0xf]
    %v1979 = vld [vmem:[%s9 + $0x28] sm:$0xf]
    %v1980 = vld [vmem:[%s9 + $0x2c] sm:$0xf]
    %v1981 = vld [vmem:[%s9 + $0x30] sm:$0xf]
    %v1982 = vld [vmem:[%s9 + $0x34] sm:$0xf]
    %v1983 = vld [vmem:[%s9 + $0x38] sm:$0xf]
    %v1984 = vld [vmem:[%s9 + $0x3c] sm:$0xf]
    %v1985 = vld [vmem:[%s9 + $0x40] sm:$0xf]
    %v1986 = vld [vmem:[%s9 + $0x44] sm:$0xf]
    %v1987 = vld [vmem:[%s9 + $0x48] sm:$0xf]
    %v1988 = vld [vmem:[%s9 + $0x4c] sm:$0xf]
    %v1989 = vld [vmem:[%s9 + $0x50] sm:$0xf]
    %v1990 = vld [vmem:[%s9 + $0x54] sm:$0xf]
    %v1991 = vld [vmem:[%s9 + $0x58] sm:$0xf]
    %v1992 = vld [vmem:[%s9 + $0x5c] sm:$0xf]
    %v1993 = vld [vmem:[%s9 + $0x60] sm:$0xf]
    %v1994 = vld [vmem:[%s9 + $0x64] sm:$0xf]
    %v1995 = vld [vmem:[%s9 + $0x68] sm:$0xf]
    %v1996 = vld [vmem:[%s9 + $0x6c] sm:$0xf]
    %v1997 = vld [vmem:[%s9 + $0x70] sm:$0xf]
    %v1998 = vld [vmem:[%s9 + $0x74] sm:$0xf]
    %v1999 = vld [vmem:[%s9 + $0x78] sm:$0xf]
    %v2000 = vld [vmem:[%s9 + $0x7c] sm:$0xf]
    %v2001 = vld [vmem:[%s9 + $0x80] sm:$0xf]
    %v2002 = vld [vmem:[%s9 + $0x84] sm:$0xf]
    %v2003 = vld [vmem:[%s9 + $0x88] sm:$0xf]
    %v2004 = vld [vmem:[%s9 + $0x8c] sm:$0xf]
    %v2005 = vld [vmem:[%s9 + $0x90] sm:$0xf]
    %v2006 = vld [vmem:[%s9 + $0x94] sm:$0xf]
    %v2007 = vld [vmem:[%s9 + $0x98] sm:$0xf]
    %v2008 = vld [vmem:[%s9 + $0x9c] sm:$0xf]
    %v2009 = vld [vmem:[%s9 + $0xa0] sm:$0xf]
    %v2010 = vld [vmem:[%s9 + $0xa4] sm:$0xf]
    %v2011 = vld [vmem:[%s9 + $0xa8] sm:$0xf]
    %v2012 = vld [vmem:[%s9 + $0xac] sm:$0xf]
    %v2013 = vld [vmem:[%s9 + $0xb0] sm:$0xf]
    %v2014 = vld [vmem:[%s9 + $0xb4] sm:$0xf]
    %v2015 = vld [vmem:[%s9 + $0xb8] sm:$0xf]
    %v2016 = vld [vmem:[%s9 + $0xbc] sm:$0xf]
    %v2065 = vunpack.c.l.b16 %v1969
    %v2066 = vunpack.c.l.b16 %v1970
    %v2067 = vunpack.c.l.b16 %v1971
    %v2068 = vunpack.c.l.b16 %v1972
    %v2069 = vunpack.c.l.b16 %v1973
    %v2070 = vunpack.c.l.b16 %v1974
    %v2071 = vunpack.c.l.b16 %v1975
    %v2072 = vunpack.c.l.b16 %v1976
    %v2073 = vunpack.c.l.b16 %v1977
    %v2074 = vunpack.c.l.b16 %v1978
    %v2075 = vunpack.c.l.b16 %v1979
    %v2076 = vunpack.c.l.b16 %v1980
    %v2077 = vunpack.c.l.b16 %v1981
    %v2078 = vunpack.c.l.b16 %v1982
    %v2079 = vunpack.c.l.b16 %v1983
    %v2080 = vunpack.c.l.b16 %v1984
    %v2081 = vunpack.c.l.b16 %v1985
    %v2082 = vunpack.c.l.b16 %v1986
    %v2083 = vunpack.c.l.b16 %v1987
    %v2084 = vunpack.c.l.b16 %v1988
    %v2085 = vunpack.c.l.b16 %v1989
    %v2086 = vunpack.c.l.b16 %v1990
    %v2087 = vunpack.c.l.b16 %v1991
    %v2088 = vunpack.c.l.b16 %v1992
    %v2089 = vunpack.c.l.b16 %v1993
    %v2090 = vunpack.c.l.b16 %v1994
    %v2091 = vunpack.c.l.b16 %v1995
    %v2092 = vunpack.c.l.b16 %v1996
    %v2093 = vunpack.c.l.b16 %v1997
    %v2094 = vunpack.c.l.b16 %v1998
    %v2095 = vunpack.c.l.b16 %v1999
    %v2096 = vunpack.c.l.b16 %v2000
    %v2097 = vunpack.c.l.b16 %v2001
    %v2098 = vunpack.c.l.b16 %v2002
    %v2099 = vunpack.c.l.b16 %v2003
    %v2100 = vunpack.c.l.b16 %v2004
    %v2101 = vunpack.c.l.b16 %v2005
    %v2102 = vunpack.c.l.b16 %v2006
    %v2103 = vunpack.c.l.b16 %v2007
    %v2104 = vunpack.c.l.b16 %v2008
    %v2105 = vunpack.c.l.b16 %v2009
    %v2106 = vunpack.c.l.b16 %v2010
    %v2107 = vunpack.c.l.b16 %v2011
    %v2108 = vunpack.c.l.b16 %v2012
    %v2109 = vunpack.c.l.b16 %v2013
    %v2110 = vunpack.c.l.b16 %v2014
    %v2111 = vunpack.c.l.b16 %v2015
    %v2112 = vunpack.c.l.b16 %v2016
    %v2113 = vpack.c.b16 %v2066, %v2065
    %v2114 = vpack.c.b16 %v2068, %v2067
    %v2115 = vpack.c.b16 %v2070, %v2069
    %v2116 = vpack.c.b16 %v2072, %v2071
    %v2117 = vpack.c.b16 %v2074, %v2073
    %v2118 = vpack.c.b16 %v2076, %v2075
    %v2119 = vpack.c.b16 %v2078, %v2077
    %v2120 = vpack.c.b16 %v2080, %v2079
    %v2121 = vpack.c.b16 %v2082, %v2081
    %v2122 = vpack.c.b16 %v2084, %v2083
    %v2123 = vpack.c.b16 %v2086, %v2085
    %v2124 = vpack.c.b16 %v2088, %v2087
    %v2125 = vpack.c.b16 %v2090, %v2089
    %v2126 = vpack.c.b16 %v2092, %v2091
    %v2127 = vpack.c.b16 %v2094, %v2093
    %v2128 = vpack.c.b16 %v2096, %v2095
    %v2129 = vpack.c.b16 %v2098, %v2097
    %v2130 = vpack.c.b16 %v2100, %v2099
    %v2131 = vpack.c.b16 %v2102, %v2101
    %v2132 = vpack.c.b16 %v2104, %v2103
    %v2133 = vpack.c.b16 %v2106, %v2105
    %v2134 = vpack.c.b16 %v2108, %v2107
    %v2135 = vpack.c.b16 %v2110, %v2109
    %v2136 = vpack.c.b16 %v2112, %v2111
    %2161 = vmatprep.subr.bf16.mxu0 0
    %2162 = vmatpush1.bf16.msra.mxu0 %v2113
    %2163 = vmatprep.subr.bf16.mxu0 0
    %2164 = vmatpush1.bf16.msra.mxu0 %v2114
    %2165 = vmatprep.subr.bf16.mxu0 0
    %2166 = vmatpush1.bf16.msra.mxu0 %v2115
    %2167 = vmatprep.subr.bf16.mxu0 0
    %2168 = vmatpush1.bf16.msra.mxu0 %v2116
    %2169 = vmatprep.subr.bf16.mxu0 0
    %2170 = vmatpush1.bf16.msra.mxu0 %v2117
    %2171 = vmatprep.subr.bf16.mxu0 0
    %2172 = vmatpush1.bf16.msra.mxu0 %v2118
    %2173 = vmatprep.subr.bf16.mxu0 0
    %2174 = vmatpush1.bf16.msra.mxu0 %v2119
    %2175 = vmatprep.subr.bf16.mxu0 0
    %2176 = vmatpush1.bf16.msra.mxu0 %v2120
    %2177 = vmatprep.subr.bf16.mxu0 0
    %2178 = vmatpush1.bf16.msra.mxu0 %v2121
    %2179 = vmatprep.subr.bf16.mxu0 0
    %2180 = vmatpush1.bf16.msra.mxu0 %v2122
    %2181 = vmatprep.subr.bf16.mxu0 0
    %2182 = vmatpush1.bf16.msra.mxu0 %v2123
    %2183 = vmatprep.subr.bf16.mxu0 0
    %2184 = vmatpush1.bf16.msra.mxu0 %v2124
    %2185 = vmatprep.subr.bf16.mxu0 0
    %2186 = vmatpush1.bf16.msra.mxu0 %v2125
    %2187 = vmatprep.subr.bf16.mxu0 0
    %2188 = vmatpush1.bf16.msra.mxu0 %v2126
    %2189 = vmatprep.subr.bf16.mxu0 0
    %2190 = vmatpush1.bf16.msra.mxu0 %v2127
    %2191 = vmatprep.subr.bf16.mxu0 0
    %2192 = vmatpush1.bf16.msra.mxu0 %v2128
    %2193 = vmatprep.mubr.bf16.mxu0 %v1967
    %2194 = vmatmul.mubr.bf16.gmra.mrb[0].mxu0 %v1966
    %v2195 = vpop.f32.mrb[0].mxu0
    %v2196 = vadd.f32 0.0, %v2195
    %v2197 = vpop.f32.mrb[0].mxu0
    %v2198 = vpop.f32.mrb[0].mxu0
    %v2199 = vadd.f32 0.0, %v2198
    %v2200 = vpop.f32.mrb[0].mxu0
    %2201 = vdwg.mxu0
    %2202 = vmatprep.subr.bf16.mxu0 0
    %2203 = vmatpush1.bf16.msra.mxu0 %v2129
    %2204 = vmatprep.subr.bf16.mxu0 0
    %2205 = vmatpush1.bf16.msra.mxu0 %v2130
    %2206 = vmatprep.subr.bf16.mxu0 0
    %2207 = vmatpush1.bf16.msra.mxu0 %v2131
    %2208 = vmatprep.subr.bf16.mxu0 0
    %2209 = vmatpush1.bf16.msra.mxu0 %v2132
    %2210 = vmatprep.subr.bf16.mxu0 0
    %2211 = vmatpush1.bf16.msra.mxu0 %v2133
    %2212 = vmatprep.subr.bf16.mxu0 0
    %2213 = vmatpush1.bf16.msra.mxu0 %v2134
    %2214 = vmatprep.subr.bf16.mxu0 0
    %2215 = vmatpush1.bf16.msra.mxu0 %v2135
    %2216 = vmatprep.subr.bf16.mxu0 0
    %2217 = vmatpush1.bf16.msra.mxu0 %v2136
    %2218 = vmatprep.subr.bf16.mxu0 0
    %2219 = vmatpush1.bf16.msra.mxu0 0
    %2220 = vmatprep.subr.bf16.mxu0 0
    %2221 = vmatpush1.bf16.msra.mxu0 0
    %2222 = vmatprep.subr.bf16.mxu0 0
    %2223 = vmatpush1.bf16.msra.mxu0 0
    %2224 = vmatprep.subr.bf16.mxu0 0
    %2225 = vmatpush1.bf16.msra.mxu0 0
    %2226 = vmatprep.subr.bf16.mxu0 0
    %2227 = vmatpush1.bf16.msra.mxu0 0
    %2228 = vmatprep.subr.bf16.mxu0 0
    %2229 = vmatpush1.bf16.msra.mxu0 0
    %2230 = vmatprep.subr.bf16.mxu0 0
    %2231 = vmatpush1.bf16.msra.mxu0 0
    %2232 = vmatprep.subr.bf16.mxu0 0
    %2233 = vmatpush1.bf16.msra.mxu0 0
    %2234 = vmatprep.mubr.bf16.mxu0 0
    %2235 = vmatmul.mubr.bf16.gmra.mrb[0].mxu0 %v1968
    %v2236 = vpop.f32.mrb[0].mxu0
    %v2237 = vadd.f32 %v2196, %v2236
    %v2238 = vpop.f32.mrb[0].mxu0
    %v2239 = vpop.f32.mrb[0].mxu0
    %v2240 = vadd.f32 %v2199, %v2239
    %v2241 = vpop.f32.mrb[0].mxu0
    %2242 = vdwg.mxu0
    %v2243 = vand.u32 %v993, 7
    %v2244 = vand.u32 %v994, 7
    %vm2245 = vcmp.lt.s32.totalorder %v2243, 1
    %vm2246 = vcmp.lt.s32.totalorder %v2244, 1
    %v2247 = vsel %vm2245, %v2237, 0.0
    %v2248 = vsel %vm2246, %v2240, 0.0
    %v2249 = vadd.f32 %v2247, %v2248
    %v2250 = vrot.slane %v2249, 4
    %v2251 = vadd.f32 %v2249, %v2250
    %v2252 = vrot.slane %v2251, 2
    %v2253 = vadd.f32 %v2251, %v2252
    %v2254 = vrot.slane %v2253, 1
    %v2255 = vadd.f32 %v2253, %v2254
    %v2256 = vmul.f32 %v2255, 0.5
    %v2257 = vmul.f32 %v2247, %v2247
    %v2258 = vmul.f32 %v2248, %v2248
    %v2259 = vadd.f32 %v2257, %v2258
    %v2260 = vrot.slane %v2259, 4
    %v2261 = vadd.f32 %v2259, %v2260
    %v2262 = vrot.slane %v2261, 2
    %v2263 = vadd.f32 %v2261, %v2262
    %v2264 = vrot.slane %v2263, 1
    %v2265 = vadd.f32 %v2263, %v2264
    %v2266 = vmul.f32 %v2265, 0.5
    %v2267 = vmul.f32 %v2256, %v2256
    %v2268 = vsub.f32 %v2266, %v2267
    %v2269 = vmax.f32 %v2268, 0.0
    %v2270 = vld [vmem:[%s10] sm:$0x1]
    %v2271 = vadd.f32 %v2269, 1e-05
    %v2272 = vrsqrt.pop %v2271
    %v2273 = vmul.f32 %v2270, %v2272
    %v2274 = vld [vmem:[%s11] sm:$0x1]
    %v2275 = vmul.f32 %v2256, %v2273
    %v2276 = vsub.f32 %v2274, %v2275
    %v2278 = vlaneseq
    %v2279 = vshrl.u32 %v2278, 7
    %v2280 = vsub.s32 0, %v2279
    %v2281 = vrot.slane %v2273, %v2280
    %v2283 = vmul.f32 %v2237, %v2281
    %v2284 = vmul.f32 %v2240, %v2281
    %v2286 = vlaneseq
    %v2287 = vshrl.u32 %v2286, 7
    %v2288 = vsub.s32 0, %v2287
    %v2289 = vrot.slane %v2276, %v2288
    %v2291 = vadd.f32 %v2283, %v2289
    %v2292 = vadd.f32 %v2284, %v2289
    %v2293 = vmax.f32 %v2291, 0.0
    %v2294 = vmax.f32 %v2292, 0.0
    %v2295 = vld [vmem:[%s18] sm:$0xff]
    %vm2296 = vcmask 130048
    %v2298 = vsel %vm2296, %v2295, 0
    %2300 = vmatprep.subr.mxu0 0.0
    %2301 = vmatpush1.msra.mxu0 %v2293
    %2302 = vmatprep.subr.mxu0 0.0
    %2303 = vmatpush1.msra.mxu0 %v2294
    %2304 = vmatprep.subr.mxu0 0.0
    %2305 = vmatpush1.msra.mxu0 0.0
    %2306 = vmatprep.subr.mxu0 0.0
    %2307 = vmatpush1.msra.mxu0 0.0
    %2308 = vmatprep.subr.mxu0 0.0
    %2309 = vmatpush1.msra.mxu0 0.0
    %2310 = vmatprep.subr.mxu0 0.0
    %2311 = vmatpush1.msra.mxu0 0.0
    %2312 = vmatprep.subr.mxu0 0.0
    %2313 = vmatpush1.msra.mxu0 0.0
    %2314 = vmatprep.subr.mxu0 0.0
    %2315 = vmatpush1.msra.mxu0 0.0
    %2316 = vmatprep.subr.mxu0 0.0
    %2317 = vmatpush1.msra.mxu0 0.0
    %2318 = vmatprep.subr.mxu0 0.0
    %2319 = vmatpush1.msra.mxu0 0.0
    %2320 = vmatprep.subr.mxu0 0.0
    %2321 = vmatpush1.msra.mxu0 0.0
    %2322 = vmatprep.subr.mxu0 0.0
    %2323 = vmatpush1.msra.mxu0 0.0
    %2324 = vmatprep.subr.mxu0 0.0
    %2325 = vmatpush1.msra.mxu0 0.0
    %2326 = vmatprep.subr.mxu0 0.0
    %2327 = vmatpush1.msra.mxu0 0.0
    %2328 = vmatprep.subr.mxu0 0.0
    %2329 = vmatpush1.msra.mxu0 0.0
    %2330 = vmatprep.subr.mxu0 0.0
    %2331 = vmatpush1.msra.mxu0 0.0
    %2332 = vmatprep.subr.mxu0 0.0
    %2333 = vmatpush1.msra.mxu0 0.0
    %2334 = vmatprep.subr.mxu0 0.0
    %2335 = vmatpush1.msra.mxu0 0.0
    %2336 = vmatprep.subr.mxu0 0.0
    %2337 = vmatpush1.msra.mxu0 0.0
    %2338 = vmatprep.subr.mxu0 0.0
    %2339 = vmatpush1.msra.mxu0 0.0
    %2340 = vmatprep.subr.mxu0 0.0
    %2341 = vmatpush1.msra.mxu0 0.0
    %2342 = vmatprep.subr.mxu0 0.0
    %2343 = vmatpush1.msra.mxu0 0.0
    %2344 = vmatprep.subr.mxu0 0.0
    %2345 = vmatpush1.msra.mxu0 0.0
    %2346 = vmatprep.subr.mxu0 0.0
    %2347 = vmatpush1.msra.mxu0 0.0
    %2348 = vmatprep.subr.mxu0 0.0
    %2349 = vmatpush1.msra.mxu0 0.0
    %2350 = vmatprep.subr.mxu0 0.0
    %2351 = vmatpush1.msra.mxu0 0.0
    %2352 = vmatprep.subr.mxu0 0.0
    %2353 = vmatpush1.msra.mxu0 0.0
    %2354 = vmatprep.subr.mxu0 0.0
    %2355 = vmatpush1.msra.mxu0 0.0
    %2356 = vmatprep.subr.mxu0 0.0
    %2357 = vmatpush1.msra.mxu0 0.0
    %2358 = vmatprep.subr.mxu0 0.0
    %2359 = vmatpush1.msra.mxu0 0.0
    %2360 = vmatprep.subr.mxu0 0.0
    %2361 = vmatpush1.msra.mxu0 0.0
    %2362 = vmatprep.subr.mxu0 0.0
    %2363 = vmatpush1.msra.mxu0 0.0
    %2364 = vmatprep.mubr.f32.mxu0 0.0
    %2365 = vmatmul.mubr.f32.gmra.mrb[0].mxu0 %v2298
    %v2366 = vpop.f32.mrb[0].mxu0
    %v2367 = vadd.f32 0.0, %v2366
    %v2368 = vpop.f32.mrb[0].mxu0
    %2369 = vdwg.mxu0
    %v2370 = vpack.c.bf16 %v2367, %v2367
    %v2371 = vld [vmem:[%s12] sm:$0xf]
    %v2372 = vld [vmem:[%s12 + $0x4] sm:$0xf]
    %v2373 = vld [vmem:[%s12 + $0x8] sm:$0xf]
    %v2374 = vld [vmem:[%s12 + $0xc] sm:$0xf]
    %v2375 = vld [vmem:[%s12 + $0x10] sm:$0xf]
    %v2376 = vld [vmem:[%s12 + $0x14] sm:$0xf]
    %v2377 = vld [vmem:[%s12 + $0x18] sm:$0xf]
    %v2378 = vld [vmem:[%s12 + $0x1c] sm:$0xf]
    %v2379 = vld [vmem:[%s12 + $0x20] sm:$0xf]
    %v2380 = vld [vmem:[%s12 + $0x24] sm:$0xf]
    %v2381 = vld [vmem:[%s12 + $0x28] sm:$0xf]
    %v2382 = vld [vmem:[%s12 + $0x2c] sm:$0xf]
    %v2383 = vld [vmem:[%s12 + $0x30] sm:$0xf]
    %v2384 = vld [vmem:[%s12 + $0x34] sm:$0xf]
    %v2385 = vld [vmem:[%s12 + $0x38] sm:$0xf]
    %v2386 = vld [vmem:[%s12 + $0x3c] sm:$0xf]
    %v2387 = vld [vmem:[%s13] sm:$0x1]
    %v2389 = vlaneseq
    %v2390 = vshrl.u32 %v2389, 7
    %v2391 = vsub.s32 0, %v2390
    %v2392 = vrot.slane %v2387, %v2391
    %v2410 = vunpack.c.l.b16 %v2371
    %v2411 = vunpack.c.l.b16 %v2372
    %v2412 = vunpack.c.l.b16 %v2373
    %v2413 = vunpack.c.l.b16 %v2374
    %v2414 = vunpack.c.l.b16 %v2375
    %v2415 = vunpack.c.l.b16 %v2376
    %v2416 = vunpack.c.l.b16 %v2377
    %v2417 = vunpack.c.l.b16 %v2378
    %v2418 = vunpack.c.l.b16 %v2379
    %v2419 = vunpack.c.l.b16 %v2380
    %v2420 = vunpack.c.l.b16 %v2381
    %v2421 = vunpack.c.l.b16 %v2382
    %v2422 = vunpack.c.l.b16 %v2383
    %v2423 = vunpack.c.l.b16 %v2384
    %v2424 = vunpack.c.l.b16 %v2385
    %v2425 = vunpack.c.l.b16 %v2386
    %v2426 = vpack.c.b16 %v2411, %v2410
    %v2427 = vpack.c.b16 %v2413, %v2412
    %v2428 = vpack.c.b16 %v2415, %v2414
    %v2429 = vpack.c.b16 %v2417, %v2416
    %v2430 = vpack.c.b16 %v2419, %v2418
    %v2431 = vpack.c.b16 %v2421, %v2420
    %v2432 = vpack.c.b16 %v2423, %v2422
    %v2433 = vpack.c.b16 %v2425, %v2424
    %2442 = vmatprep.subr.bf16.mxu0 0
    %2443 = vmatpush1.bf16.msra.mxu0 %v2426
    %2444 = vmatprep.subr.bf16.mxu0 0
    %2445 = vmatpush1.bf16.msra.mxu0 %v2427
    %2446 = vmatprep.subr.bf16.mxu0 0
    %2447 = vmatpush1.bf16.msra.mxu0 %v2428
    %2448 = vmatprep.subr.bf16.mxu0 0
    %2449 = vmatpush1.bf16.msra.mxu0 %v2429
    %2450 = vmatprep.subr.bf16.mxu0 0
    %2451 = vmatpush1.bf16.msra.mxu0 %v2430
    %2452 = vmatprep.subr.bf16.mxu0 0
    %2453 = vmatpush1.bf16.msra.mxu0 %v2431
    %2454 = vmatprep.subr.bf16.mxu0 0
    %2455 = vmatpush1.bf16.msra.mxu0 %v2432
    %2456 = vmatprep.subr.bf16.mxu0 0
    %2457 = vmatpush1.bf16.msra.mxu0 %v2433
    %2458 = vmatprep.subr.bf16.mxu0 0
    %2459 = vmatpush1.bf16.msra.mxu0 0
    %2460 = vmatprep.subr.bf16.mxu0 0
    %2461 = vmatpush1.bf16.msra.mxu0 0
    %2462 = vmatprep.subr.bf16.mxu0 0
    %2463 = vmatpush1.bf16.msra.mxu0 0
    %2464 = vmatprep.subr.bf16.mxu0 0
    %2465 = vmatpush1.bf16.msra.mxu0 0
    %2466 = vmatprep.subr.bf16.mxu0 0
    %2467 = vmatpush1.bf16.msra.mxu0 0
    %2468 = vmatprep.subr.bf16.mxu0 0
    %2469 = vmatpush1.bf16.msra.mxu0 0
    %2470 = vmatprep.subr.bf16.mxu0 0
    %2471 = vmatpush1.bf16.msra.mxu0 0
    %2472 = vmatprep.subr.bf16.mxu0 0
    %2473 = vmatpush1.bf16.msra.mxu0 0
    %2474 = vmatprep.mubr.bf16.mxu0 0
    %2475 = vmatmul.mubr.bf16.gmra.mrb[0].mxu0 %v2370
    %v2476 = vpop.f32.mrb[0].mxu0
    %v2477 = vadd.f32 %v2392, %v2476
    %v2478 = vpop.f32.mrb[0].mxu0
    %v2479 = vpop.f32.mrb[0].mxu0
    %v2480 = vpop.f32.mrb[0].mxu0
    %2481 = vdwg.mxu0
    %v2482 = vmax.f32 %v2477, 0.0
    %v2483 = vpack.c.bf16 %v2482, %v2482
    %v2484 = vld [vmem:[#allocation4] sm:$0xf]
    %v2485 = vld [vmem:[#allocation4 + $0x4] sm:$0xf]
    %v2486 = vld [vmem:[#allocation4 + $0x8] sm:$0xf]
    %v2487 = vld [vmem:[#allocation4 + $0xc] sm:$0xf]
    %v2488 = vld [vmem:[#allocation4 + $0x10] sm:$0xf]
    %v2489 = vld [vmem:[#allocation4 + $0x14] sm:$0xf]
    %v2490 = vld [vmem:[#allocation4 + $0x18] sm:$0xf]
    %v2491 = vld [vmem:[#allocation4 + $0x1c] sm:$0xf]
    %v2492 = vld [vmem:[#allocation4 + $0x20] sm:$0xf]
    %v2493 = vld [vmem:[#allocation4 + $0x24] sm:$0xf]
    %v2494 = vld [vmem:[#allocation4 + $0x28] sm:$0xf]
    %v2495 = vld [vmem:[#allocation4 + $0x2c] sm:$0xf]
    %v2496 = vld [vmem:[#allocation4 + $0x30] sm:$0xf]
    %v2497 = vld [vmem:[#allocation4 + $0x34] sm:$0xf]
    %v2498 = vld [vmem:[#allocation4 + $0x38] sm:$0xf]
    %v2499 = vld [vmem:[#allocation4 + $0x3c] sm:$0xf]
    %v2500 = vld [vmem:[%s15] sm:$0x1]
    %v2502 = vlaneseq
    %v2503 = vshrl.u32 %v2502, 7
    %v2504 = vsub.s32 0, %v2503
    %v2505 = vrot.slane %v2500, %v2504
    %v2523 = vunpack.c.l.b16 %v2484
    %v2524 = vunpack.c.l.b16 %v2485
    %v2525 = vunpack.c.l.b16 %v2486
    %v2526 = vunpack.c.l.b16 %v2487
    %v2527 = vunpack.c.l.b16 %v2488
    %v2528 = vunpack.c.l.b16 %v2489
    %v2529 = vunpack.c.l.b16 %v2490
    %v2530 = vunpack.c.l.b16 %v2491
    %v2531 = vunpack.c.l.b16 %v2492
    %v2532 = vunpack.c.l.b16 %v2493
    %v2533 = vunpack.c.l.b16 %v2494
    %v2534 = vunpack.c.l.b16 %v2495
    %v2535 = vunpack.c.l.b16 %v2496
    %v2536 = vunpack.c.l.b16 %v2497
    %v2537 = vunpack.c.l.b16 %v2498
    %v2538 = vunpack.c.l.b16 %v2499
    %v2539 = vpack.c.b16 %v2524, %v2523
    %v2540 = vpack.c.b16 %v2526, %v2525
    %v2541 = vpack.c.b16 %v2528, %v2527
    %v2542 = vpack.c.b16 %v2530, %v2529
    %v2543 = vpack.c.b16 %v2532, %v2531
    %v2544 = vpack.c.b16 %v2534, %v2533
    %v2545 = vpack.c.b16 %v2536, %v2535
    %v2546 = vpack.c.b16 %v2538, %v2537
    %2555 = vmatprep.subr.bf16.mxu0 0
    %2556 = vmatpush1.bf16.msra.mxu0 %v2539
    %2557 = vmatprep.subr.bf16.mxu0 0
    %2558 = vmatpush1.bf16.msra.mxu0 %v2540
    %2559 = vmatprep.subr.bf16.mxu0 0
    %2560 = vmatpush1.bf16.msra.mxu0 %v2541
    %2561 = vmatprep.subr.bf16.mxu0 0
    %2562 = vmatpush1.bf16.msra.mxu0 %v2542
    %2563 = vmatprep.subr.bf16.mxu0 0
    %2564 = vmatpush1.bf16.msra.mxu0 %v2543
    %2565 = vmatprep.subr.bf16.mxu0 0
    %2566 = vmatpush1.bf16.msra.mxu0 %v2544
    %2567 = vmatprep.subr.bf16.mxu0 0
    %2568 = vmatpush1.bf16.msra.mxu0 %v2545
    %2569 = vmatprep.subr.bf16.mxu0 0
    %2570 = vmatpush1.bf16.msra.mxu0 %v2546
    %2571 = vmatprep.subr.bf16.mxu0 0
    %2572 = vmatpush1.bf16.msra.mxu0 0
    %2573 = vmatprep.subr.bf16.mxu0 0
    %2574 = vmatpush1.bf16.msra.mxu0 0
    %2575 = vmatprep.subr.bf16.mxu0 0
    %2576 = vmatpush1.bf16.msra.mxu0 0
    %2577 = vmatprep.subr.bf16.mxu0 0
    %2578 = vmatpush1.bf16.msra.mxu0 0
    %2579 = vmatprep.subr.bf16.mxu0 0
    %2580 = vmatpush1.bf16.msra.mxu0 0
    %2581 = vmatprep.subr.bf16.mxu0 0
    %2582 = vmatpush1.bf16.msra.mxu0 0
    %2583 = vmatprep.subr.bf16.mxu0 0
    %2584 = vmatpush1.bf16.msra.mxu0 0
    %2585 = vmatprep.subr.bf16.mxu0 0
    %2586 = vmatpush1.bf16.msra.mxu0 0
    %2587 = vmatprep.mubr.bf16.mxu0 0
    %2588 = vmatmul.mubr.bf16.gmra.mrb[0].mxu0 %v2483
    %v2589 = vpop.f32.mrb[0].mxu0
    %v2590 = vadd.f32 %v2505, %v2589
    %v2591 = vpop.f32.mrb[0].mxu0
    %v2592 = vpop.f32.mrb[0].mxu0
    %v2593 = vpop.f32.mrb[0].mxu0
    %2594 = vdwg.mxu0
    %2595 = vst [vmem:[%s19] sm:$0xff] %v2590
    // Predicated region
    $region86: #{manifoldnet_forward.1} parent=1 // pred_check
      _
    $region87: #{manifoldnet_forward.1} parent=1 // pred_check_branch
      %2597 = sbr.rel (0) target = $region89
    $region88: #{manifoldnet_forward.1} parent=1 // pred_region
      _
    $region89: #{manifoldnet_forward.1} parent=1 // pred_fallthru
      _
    // Predicated region
    $region90: #{manifoldnet_forward.1} parent=1 // pred_check
      _
    $region91: #{manifoldnet_forward.1} parent=1 // pred_check_branch
      %2599 = sbr.rel (0) target = $region93
    $region92: #{manifoldnet_forward.1} parent=1 // pred_region
      _
    $region93: #{manifoldnet_forward.1} parent=1 // pred_fallthru
      _
    %2600 = vsyncpa [#allocation3], 1
    %2601 = vsyncpa [#allocation5], 1

</llo_original>
